<compile_context>
chip_gen: v5e
topology: v5e:2x2
jax: 0.10.0
libtpu: 0.0.40
codegen_flags: <defaults>
</compile_context>

<pallas_src>
import functools

import jax
import jax.numpy as jnp
from jax.experimental import pallas as pl
from jax.experimental.pallas import tpu as pltpu

# DenseCRF.__init__ defaults
MAX_ITER = 10
POS_W, POS_XY_STD = 3.0, 1.0
BI_W, BI_XY_STD, BI_RGB_STD = 4.0, 67.0, 3.0
MEAN = (0.485, 0.456, 0.406)
STD = (0.229, 0.224, 0.225)


def _vmem_limit_bytes():
    # Raise the scoped-VMEM limit so the resident N x N kernels fit, leaving
    # ~25% headroom (~96 MiB on v5e/v6e, ~48 MiB on v7x).
    try:
        cap = int(pltpu.get_tpu_info().vmem_capacity_bytes)
    except Exception:
        cap = 64 * 1024 * 1024  # conservative fallback (v7x-sized)
    return (3 * cap) // 4


def _strip_size(n):
    # Row-strip size for the bilateral build: multiple of 128 (lane-aligned
    # dynamic slices of the (8, N) feature block) that divides N.
    for s in (512, 256, 128):
        if n >= s and n % s == 0:
            return s
    return n  # tiny / odd N: single strip


def _softmax_classes(x, *, approx):
    # softmax over the class (sublane) axis == pydensecrf expAndNormalize
    m = jnp.max(x, axis=0, keepdims=True)
    e = jnp.exp(x - m)
    s = jnp.sum(e, axis=0, keepdims=True)
    if approx:
        return e * pl.reciprocal(s, approx=True)   # EUP slot, off the VPU
    return e / s


def dense_crf_kernel(kpos_ref, logits_ref, fbi_ref, nhcol_ref, q_ref,
                     kcomb_ref, csum_ref, *, max_iter, bi_w, strip, n_strips):
    # kpos_ref : (N, N) bf16   pos_w * D^-1/2 K_pos D^-1/2 (batch-invariant,
    #                          single-buffered, stays resident across batch)
    # logits_ref: (1, C, N) f32
    # fbi_ref  : (1, 8, N) f32 rows [x/sxy, y/sxy, r/srgb, g/srgb, b/srgb,0,0,0]
    # nhcol_ref: (1, N, 1) f32 per-pixel -0.5*||f||^2 (column layout)
    # q_ref    : (1, C, N) f32 output
    # kcomb_ref: (N, N) bf16 scratch (fused pairwise kernel)
    # csum_ref : (1, N) f32 scratch (column sums of the bilateral kernel)

    fbi = fbi_ref[0]                                              # (8, N)
    # -0.5*||f_j||^2 lane-dense row, exact f32 (hoisted out of the strip loop)
    nh_row = -0.5 * jnp.sum(fbi * fbi, axis=0, keepdims=True)     # (1, N)

    csum_ref[...] = jnp.zeros_like(csum_ref)

    # ---- Pass 1: strip-tiled bilateral build, row-normalized in place ----
    @pl.loop(0, n_strips)
    def _(s):
        i0 = pl.multiple_of(s * strip, strip)
        f_s = fbi_ref[0, :, pl.ds(i0, strip)]                     # (8, S)
        nh_c = nhcol_ref[0, pl.ds(i0, strip), :]                  # (S, 1)
        gram = jax.lax.dot_general(f_s, fbi, (((0,), (0,)), ((), ())),
                                   preferred_element_type=jnp.float32)  # (S,N)
        # exp(-0.5||f_i - f_j||^2) with constants folded into the exponent
        k = jnp.exp(gram + nh_c + nh_row)                         # (S, N)
        rsum = jnp.sum(k, axis=1, keepdims=True)                  # (S, 1)
        csum_ref[...] += jnp.sum(k, axis=0, keepdims=True)        # (1, N)
        # store row-normalized strip; column normalization happens in pass 2
        kcomb_ref[pl.ds(i0, strip), :] = (
            jax.lax.rsqrt(rsum) * k).astype(jnp.bfloat16)

    # ---- Pass 2: column normalization + fuse the positional half ----
    # K_bi symmetric => column sums == row sums; no transpose / extra pass.
    coln = bi_w * jax.lax.rsqrt(csum_ref[...] + 1e-20)            # (1, N)

    @pl.loop(0, n_strips)
    def _(s):
        i0 = pl.multiple_of(s * strip, strip)
        rows = pl.ds(i0, strip)
        bi = kcomb_ref[rows, :].astype(jnp.float32) * coln
        kcomb_ref[rows, :] = (
            bi + kpos_ref[rows, :].astype(jnp.float32)).astype(jnp.bfloat16)

    # ---- Unary: U = -log(clip(softmax(logits), 1e-5, 1)) ----
    logits = logits_ref[0]                                        # (C, N)
    probs = _softmax_classes(logits, approx=False)
    unary = -jnp.log(jnp.clip(probs, 1e-5, 1.0))

    def mf_step(q, approx):
        # message(c,i) = sum_j K(i,j) q(c,j) = (q @ K)(c,i)  (K symmetric)
        msg = jnp.dot(q.astype(jnp.bfloat16), kcomb_ref[...],
                      preferred_element_type=jnp.float32)         # (C, N)
        # Potts compatibility (weights folded into K): softmax(-U + K*Q)
        return _softmax_classes(-unary + msg, approx=approx)

    # startInference: Q = expAndNormalize(-U)
    q = _softmax_classes(-unary, approx=True)
    q = jax.lax.fori_loop(0, max_iter - 1, lambda _, qq: mf_step(qq, True), q)
    q_ref[0] = mf_step(q, False)          # exact normalization for the output


def dense_crf(logits, image):
    """logits: (B, Nc, H, W) float32 ; image: (B, 3, H, W) normalized float32.
    Returns Q: (B, Nc, H, W) float32 (same convention as DenseCRF.forward)."""
    B, C, H, W = logits.shape
    N = H * W
    f32 = jnp.float32

    # ---- glue: denormalize image (std*x + mean, clip to [0,1], uint8 trunc) ----
    img = jnp.transpose(image, (0, 2, 3, 1)).astype(f32)              # (B,H,W,3)
    img = img * jnp.asarray(STD, f32) + jnp.asarray(MEAN, f32)
    img = jnp.floor(255.0 * jnp.clip(img, 0.0, 1.0))   # emulates np.uint8 trunc

    # ---- pixel coordinates (pixel index = h*W + w) ----
    ys, xs = jnp.meshgrid(jnp.arange(H, dtype=f32),
                          jnp.arange(W, dtype=f32), indexing="ij")
    xs = xs.reshape(N)
    ys = ys.reshape(N)

    # ---- batch-invariant positional half of the fused kernel (XLA, once) ----
    fpos = jnp.stack([xs, ys], axis=-1) / POS_XY_STD                  # (N, 2)
    sp = jnp.sum(fpos * fpos, axis=-1, keepdims=True)                 # (N, 1)
    gp = fpos @ fpos.T                                                # (N, N)
    k_pos = jnp.exp(-0.5 * jnp.maximum(sp + sp.T - 2.0 * gp, 0.0))
    n_pos = jax.lax.rsqrt(jnp.sum(k_pos, axis=-1, keepdims=True) + 1e-20)
    kpos_half = (POS_W * n_pos * k_pos * n_pos.T).astype(jnp.bfloat16)  # (N, N)

    # ---- per-sample bilateral features, lane-dense zero-padded (B, 8, N) ----
    fxy = jnp.stack([xs, ys], axis=0) / BI_XY_STD                     # (2, N)
    fxy = jnp.broadcast_to(fxy[None], (B, 2, N))
    frgb = jnp.transpose(img.reshape(B, N, 3), (0, 2, 1)) / BI_RGB_STD  # (B,3,N)
    fbi = jnp.concatenate([fxy, frgb, jnp.zeros((B, 3, N), f32)], axis=1)
    # -0.5*||f||^2 as a column (exact f32 added outside the MXU path)
    nhcol = (-0.5 * jnp.sum(fbi * fbi, axis=1))[..., None]            # (B, N, 1)

    logits_cn = logits.reshape(B, C, N).astype(f32)                   # (B, C, N)

    strip = _strip_size(N)
    n_strips = N // strip

    kernel = functools.partial(dense_crf_kernel, max_iter=MAX_ITER,
                               bi_w=BI_W, strip=strip, n_strips=n_strips)

    q = pl.pallas_call(
        kernel,
        out_shape=jax.ShapeDtypeStruct((B, C, N), f32),
        grid_spec=pltpu.PrefetchScalarGridSpec(
            num_scalar_prefetch=0,
            grid=(B,),
            in_specs=[
                # batch-invariant block: constant index -> stays resident;
                # Buffered(1) drops the useless second buffer (saves 2*N^2 B).
                pl.BlockSpec((N, N), lambda b: (0, 0),
                             pipeline_mode=pl.Buffered(1)),
                pl.BlockSpec((1, C, N), lambda b: (b, 0, 0)),
                pl.BlockSpec((1, 8, N), lambda b: (b, 0, 0)),
                pl.BlockSpec((1, N, 1), lambda b: (b, 0, 0)),
            ],
            out_specs=pl.BlockSpec((1, C, N), lambda b: (b, 0, 0)),
            scratch_shapes=[pltpu.VMEM((N, N), jnp.bfloat16),
                            pltpu.VMEM((1, N), jnp.float32)],
        ),
        compiler_params=pltpu.CompilerParams(
            dimension_semantics=("parallel",),
            vmem_limit_bytes=_vmem_limit_bytes(),
        ),
    )(kpos_half, logits_cn, fbi, nhcol)

    # (B, C, N) -> (B, Nc, H, W): matches torch.cat of per-sample Q.reshape(Nc,H,W)
    return q.reshape(B, C, H, W)


if __name__ == "__main__":
    key = jax.random.PRNGKey(0)
    k1, k2 = jax.random.split(key)
    B, C, H, W = 2, 4, 16, 16
    logits = jax.random.normal(k1, (B, C, H, W), dtype=jnp.float32)
    image = jax.random.normal(k2, (B, 3, H, W), dtype=jnp.float32)  # normalized image

    out = jax.jit(dense_crf)(logits, image)
    jax.block_until_ready(out)

    assert out.shape == (B, C, H, W), out.shape
    assert out.dtype == jnp.float32
    # Q is a per-pixel distribution over classes -> columns sum to ~1
    s = jnp.sum(out, axis=1)
    assert bool(jnp.all(jnp.abs(s - 1.0) < 1e-3))
    assert bool(jnp.all(out >= 0.0))
    print("KERNEL_OK")
</pallas_src>

<mosaic_0001>
module attributes {stable_mosaic.version = 11 : i64} {
  func.func @dense_crf_kernel(%arg0: i32, %arg1: memref<256x256xbf16, #tpu.memory_space<vmem>>, %arg2: memref<1x4x256xf32, #tpu.memory_space<vmem>>, %arg3: memref<1x8x256xf32, #tpu.memory_space<vmem>>, %arg4: memref<1x256x1xf32, #tpu.memory_space<vmem>>, %arg5: memref<1x4x256xf32, #tpu.memory_space<vmem>>, %arg6: memref<256x256xbf16, #tpu.memory_space<vmem>>, %arg7: memref<1x256xf32, #tpu.memory_space<vmem>>) attributes {dimension_semantics = [#tpu.dimension_semantics<parallel>], iteration_bounds = array<i64: 2>, scalar_prefetch = 0 : i64, scratch_operands = 2 : i64, tpu.core_type = #tpu.core_type<tc>, window_params = [{pipeline_mode = #tpu.pipeline_mode<synchronous>, transform_indices = @transform_0, window_bounds = array<i64: 256, 256>}, {transform_indices = @transform_1, window_bounds = array<i64: 1, 4, 256>}, {transform_indices = @transform_2, window_bounds = array<i64: 1, 8, 256>}, {transform_indices = @transform_3, window_bounds = array<i64: 1, 256, 1>}, {transform_indices = @transform_4, window_bounds = array<i64: 1, 4, 256>}]} {
    %c0 = arith.constant 0 : index
    %c0_0 = arith.constant 0 : index
    %c0_1 = arith.constant 0 : index
    %0 = vector.load %arg3[%c0, %c0_0, %c0_1] : memref<1x8x256xf32, #tpu.memory_space<vmem>>, vector<1x8x256xf32>
    %1 = vector.shape_cast %0 : vector<1x8x256xf32> to vector<8x256xf32>
    %2 = arith.mulf %1, %1 : vector<8x256xf32>
    %cst = arith.constant dense<0.000000e+00> : vector<256xf32>
    %3 = vector.multi_reduction <add>, %2, %cst [0] : vector<8x256xf32> to vector<256xf32>
    %4 = vector.shape_cast %3 : vector<256xf32> to vector<1x256xf32>
    %cst_2 = arith.constant -5.000000e-01 : f32
    %5 = vector.broadcast %cst_2 : f32 to vector<1x256xf32>
    %6 = arith.mulf %5, %4 : vector<1x256xf32>
    %cst_3 = arith.constant 0.000000e+00 : f32
    %7 = vector.broadcast %cst_3 : f32 to vector<1x256xf32>
    %c0_4 = arith.constant 0 : index
    %c0_5 = arith.constant 0 : index
    %8 = vector.load %arg7[%c0_4, %c0_5] : memref<1x256xf32, #tpu.memory_space<vmem>>, vector<1x256xf32>
    tpu.vector_store %arg7[%c0_4, %c0_5], %7 {strides = array<i32>} : memref<1x256xf32, #tpu.memory_space<vmem>>, vector<1x256xf32>,
    %c0_i32 = arith.constant 0 : i32
    %c1_i32 = arith.constant 1 : i32
    %9 = arith.muli %c0_i32, %c1_i32 : i32
    %c0_i32_6 = arith.constant 0 : i32
    %10 = arith.addi %c0_i32_6, %9 : i32
    %c256_i32 = arith.constant 256 : i32
    %11 = arith.muli %10, %c256_i32 : i32
    %12 = tpu.assume_multiple %11, 256 : i32
    %c0_7 = arith.constant 0 : index
    %c0_8 = arith.constant 0 : index
    %13 = arith.index_cast %12 : i32 to index
    %14 = vector.load %arg3[%c0_7, %c0_8, %13] : memref<1x8x256xf32, #tpu.memory_space<vmem>>, vector<1x8x256xf32>
    %15 = vector.shape_cast %14 : vector<1x8x256xf32> to vector<8x256xf32>
    %c0_9 = arith.constant 0 : index
    %16 = arith.index_cast %12 : i32 to index
    %c0_10 = arith.constant 0 : index
    %17 = vector.load %arg4[%c0_9, %16, %c0_10] : memref<1x256x1xf32, #tpu.memory_space<vmem>>, vector<1x256x1xf32>
    %18 = vector.shape_cast %17 : vector<1x256x1xf32> to vector<256x1xf32>
    %cst_11 = arith.constant dense<0.000000e+00> : vector<256x256xf32>
    %19 = tpu.matmul %15, %1, %cst_11 {dimension_numbers = #tpu.dot_dimension_numbers<[0], [0], [1], [1], [0, 1, 1, 1], [], []>} : vector<8x256xf32>, vector<8x256xf32>, vector<256x256xf32> -> vector<256x256xf32>
    %20 = vector.broadcast %18 : vector<256x1xf32> to vector<256x256xf32>
    %21 = arith.addf %19, %20 : vector<256x256xf32>
    %22 = vector.broadcast %6 : vector<1x256xf32> to vector<256x256xf32>
    %23 = arith.addf %21, %22 : vector<256x256xf32>
    %24 = math.exp %23 : vector<256x256xf32>
    %cst_12 = arith.constant dense<0.000000e+00> : vector<256xf32>
    %25 = vector.multi_reduction <add>, %24, %cst_12 [1] : vector<256x256xf32> to vector<256xf32>
    %26 = vector.shape_cast %25 : vector<256xf32> to vector<256x1xf32>
    %c0_13 = arith.constant 0 : index
    %c0_14 = arith.constant 0 : index
    %27 = vector.load %arg7[%c0_13, %c0_14] : memref<1x256xf32, #tpu.memory_space<vmem>>, vector<1x256xf32>
    %cst_15 = arith.constant dense<0.000000e+00> : vector<256xf32>
    %28 = vector.multi_reduction <add>, %24, %cst_15 [0] : vector<256x256xf32> to vector<256xf32>
    %29 = vector.shape_cast %28 : vector<256xf32> to vector<1x256xf32>
    %30 = arith.addf %27, %29 : vector<1x256xf32>
    %c0_16 = arith.constant 0 : index
    %c0_17 = arith.constant 0 : index
    %31 = vector.load %arg7[%c0_16, %c0_17] : memref<1x256xf32, #tpu.memory_space<vmem>>, vector<1x256xf32>
    tpu.vector_store %arg7[%c0_16, %c0_17], %30 {strides = array<i32>} : memref<1x256xf32, #tpu.memory_space<vmem>>, vector<1x256xf32>,
    %32 = math.rsqrt %26 : vector<256x1xf32>
    %33 = vector.broadcast %32 : vector<256x1xf32> to vector<256x256xf32>
    %34 = arith.mulf %33, %24 : vector<256x256xf32>
    %35 = arith.truncf %34 : vector<256x256xf32> to vector<256x256xbf16>
    %36 = arith.index_cast %12 : i32 to index
    %c0_18 = arith.constant 0 : index
    %37 = vector.load %arg6[%36, %c0_18] : memref<256x256xbf16, #tpu.memory_space<vmem>>, vector<256x256xbf16>
    tpu.vector_store %arg6[%36, %c0_18], %35 {strides = array<i32>} : memref<256x256xbf16, #tpu.memory_space<vmem>>, vector<256x256xbf16>,
    %c1_i32_19 = arith.constant 1 : i32
    %c0_20 = arith.constant 0 : index
    %c0_21 = arith.constant 0 : index
    %38 = vector.load %arg7[%c0_20, %c0_21] : memref<1x256xf32, #tpu.memory_space<vmem>>, vector<1x256xf32>
    %cst_22 = arith.constant 9.99999968E-21 : f32
    %39 = vector.broadcast %cst_22 : f32 to vector<1x256xf32>
    %40 = arith.addf %38, %39 : vector<1x256xf32>
    %41 = math.rsqrt %40 : vector<1x256xf32>
    %cst_23 = arith.constant 4.000000e+00 : f32
    %42 = vector.broadcast %cst_23 : f32 to vector<1x256xf32>
    %43 = arith.mulf %42, %41 : vector<1x256xf32>
    %c0_i32_24 = arith.constant 0 : i32
    %c1_i32_25 = arith.constant 1 : i32
    %44 = arith.muli %c0_i32_24, %c1_i32_25 : i32
    %c0_i32_26 = arith.constant 0 : i32
    %45 = arith.addi %c0_i32_26, %44 : i32
    %c256_i32_27 = arith.constant 256 : i32
    %46 = arith.muli %45, %c256_i32_27 : i32
    %47 = tpu.assume_multiple %46, 256 : i32
    %48 = arith.index_cast %47 : i32 to index
    %c0_28 = arith.constant 0 : index
    %49 = vector.load %arg6[%48, %c0_28] : memref<256x256xbf16, #tpu.memory_space<vmem>>, vector<256x256xbf16>
    %50 = arith.extf %49 : vector<256x256xbf16> to vector<256x256xf32>
    %51 = vector.broadcast %43 : vector<1x256xf32> to vector<256x256xf32>
    %52 = arith.mulf %50, %51 : vector<256x256xf32>
    %53 = arith.index_cast %47 : i32 to index
    %c0_29 = arith.constant 0 : index
    %54 = vector.load %arg1[%53, %c0_29] : memref<256x256xbf16, #tpu.memory_space<vmem>>, vector<256x256xbf16>
    %55 = arith.extf %54 : vector<256x256xbf16> to vector<256x256xf32>
    %56 = arith.addf %52, %55 : vector<256x256xf32>
    %57 = arith.truncf %56 : vector<256x256xf32> to vector<256x256xbf16>
    %58 = arith.index_cast %47 : i32 to index
    %c0_30 = arith.constant 0 : index
    %59 = vector.load %arg6[%58, %c0_30] : memref<256x256xbf16, #tpu.memory_space<vmem>>, vector<256x256xbf16>
    tpu.vector_store %arg6[%58, %c0_30], %57 {strides = array<i32>} : memref<256x256xbf16, #tpu.memory_space<vmem>>, vector<256x256xbf16>,
    %c1_i32_31 = arith.constant 1 : i32
    %c0_32 = arith.constant 0 : index
    %c0_33 = arith.constant 0 : index
    %c0_34 = arith.constant 0 : index
    %60 = vector.load %arg2[%c0_32, %c0_33, %c0_34] : memref<1x4x256xf32, #tpu.memory_space<vmem>>, vector<1x4x256xf32>
    %61 = vector.shape_cast %60 : vector<1x4x256xf32> to vector<4x256xf32>
    %cst_35 = arith.constant dense<0xFF800000> : vector<256xf32>
    %62 = vector.multi_reduction <maximumf>, %61, %cst_35 [0] : vector<4x256xf32> to vector<256xf32>
    %63 = vector.shape_cast %62 : vector<256xf32> to vector<1x256xf32>
    %64 = vector.broadcast %63 : vector<1x256xf32> to vector<4x256xf32>
    %65 = arith.subf %61, %64 : vector<4x256xf32>
    %66 = math.exp %65 : vector<4x256xf32>
    %cst_36 = arith.constant dense<0.000000e+00> : vector<256xf32>
    %67 = vector.multi_reduction <add>, %66, %cst_36 [0] : vector<4x256xf32> to vector<256xf32>
    %68 = vector.shape_cast %67 : vector<256xf32> to vector<1x256xf32>
    %69 = vector.broadcast %68 : vector<1x256xf32> to vector<4x256xf32>
    %70 = arith.divf %66, %69 : vector<4x256xf32>
    %cst_37 = arith.constant 9.99999974E-6 : f32
    %cst_38 = arith.constant 1.000000e+00 : f32
    %71 = vector.broadcast %cst_37 : f32 to vector<4x256xf32>
    %72 = arith.maximumf %71, %70 : vector<4x256xf32>
    %73 = vector.broadcast %cst_38 : f32 to vector<4x256xf32>
    %74 = arith.minimumf %73, %72 : vector<4x256xf32>
    %75 = math.log %74 : vector<4x256xf32>
    %cst_39 = arith.constant 0.000000e+00 : f32
    %76 = vector.broadcast %cst_39 : f32 to vector<4x256xf32>
    %77 = arith.subf %76, %75 : vector<4x256xf32>
    %cst_40 = arith.constant 0.000000e+00 : f32
    %78 = vector.broadcast %cst_40 : f32 to vector<4x256xf32>
    %79 = arith.subf %78, %77 : vector<4x256xf32>
    %cst_41 = arith.constant dense<0xFF800000> : vector<256xf32>
    %80 = vector.multi_reduction <maximumf>, %79, %cst_41 [0] : vector<4x256xf32> to vector<256xf32>
    %81 = vector.shape_cast %80 : vector<256xf32> to vector<1x256xf32>
    %82 = vector.broadcast %81 : vector<1x256xf32> to vector<4x256xf32>
    %83 = arith.subf %79, %82 : vector<4x256xf32>
    %84 = math.exp %83 : vector<4x256xf32>
    %cst_42 = arith.constant dense<0.000000e+00> : vector<256xf32>
    %85 = vector.multi_reduction <add>, %84, %cst_42 [0] : vector<4x256xf32> to vector<256xf32>
    %86 = vector.shape_cast %85 : vector<256xf32> to vector<1x256xf32>
    %87 = tpu.reciprocal %86 {approx = true} : vector<1x256xf32> -> vector<1x256xf32>
    %88 = vector.broadcast %87 : vector<1x256xf32> to vector<4x256xf32>
    %89 = arith.mulf %84, %88 : vector<4x256xf32>
    %c0_i32_43 = arith.constant 0 : i32
    %c9_i32 = arith.constant 9 : i32
    %90 = arith.addi %c0_i32_43, %c9_i32 : i32
    %c1_i32_44 = arith.constant 1 : i32
    %91 = scf.for %arg8 = %c0_i32_43 to %90 step %c1_i32_44 iter_args(%arg9 = %89) -> (vector<4x256xf32>)  : i32 {
      %110 = arith.truncf %arg9 : vector<4x256xf32> to vector<4x256xbf16>
      %c0_54 = arith.constant 0 : index
      %c0_55 = arith.constant 0 : index
      %111 = vector.load %arg6[%c0_54, %c0_55] : memref<256x256xbf16, #tpu.memory_space<vmem>>, vector<256x256xbf16>
      %cst_56 = arith.constant dense<0.000000e+00> : vector<4x256xf32>
      %112 = tpu.matmul %110, %111, %cst_56 {dimension_numbers = #tpu.dot_dimension_numbers<[1], [0], [0], [1], [0, 0, 1, 1], [], []>} : vector<4x256xbf16>, vector<256x256xbf16>, vector<4x256xf32> -> vector<4x256xf32>
      %cst_57 = arith.constant 0.000000e+00 : f32
      %113 = vector.broadcast %cst_57 : f32 to vector<4x256xf32>
      %114 = arith.subf %113, %77 : vector<4x256xf32>
      %115 = arith.addf %114, %112 : vector<4x256xf32>
      %cst_58 = arith.constant dense<0xFF800000> : vector<256xf32>
      %116 = vector.multi_reduction <maximumf>, %115, %cst_58 [0] : vector<4x256xf32> to vector<256xf32>
      %117 = vector.shape_cast %116 : vector<256xf32> to vector<1x256xf32>
      %118 = vector.broadcast %117 : vector<1x256xf32> to vector<4x256xf32>
      %119 = arith.subf %115, %118 : vector<4x256xf32>
      %120 = math.exp %119 : vector<4x256xf32>
      %cst_59 = arith.constant dense<0.000000e+00> : vector<256xf32>
      %121 = vector.multi_reduction <add>, %120, %cst_59 [0] : vector<4x256xf32> to vector<256xf32>
      %122 = vector.shape_cast %121 : vector<256xf32> to vector<1x256xf32>
      %123 = tpu.reciprocal %122 {approx = true} : vector<1x256xf32> -> vector<1x256xf32>
      %124 = vector.broadcast %123 : vector<1x256xf32> to vector<4x256xf32>
      %125 = arith.mulf %120, %124 : vector<4x256xf32>
      scf.yield %125 : vector<4x256xf32>
    }
    %92 = arith.truncf %91 : vector<4x256xf32> to vector<4x256xbf16>
    %c0_45 = arith.constant 0 : index
    %c0_46 = arith.constant 0 : index
    %93 = vector.load %arg6[%c0_45, %c0_46] : memref<256x256xbf16, #tpu.memory_space<vmem>>, vector<256x256xbf16>
    %cst_47 = arith.constant dense<0.000000e+00> : vector<4x256xf32>
    %94 = tpu.matmul %92, %93, %cst_47 {dimension_numbers = #tpu.dot_dimension_numbers<[1], [0], [0], [1], [0, 0, 1, 1], [], []>} : vector<4x256xbf16>, vector<256x256xbf16>, vector<4x256xf32> -> vector<4x256xf32>
    %cst_48 = arith.constant 0.000000e+00 : f32
    %95 = vector.broadcast %cst_48 : f32 to vector<4x256xf32>
    %96 = arith.subf %95, %77 : vector<4x256xf32>
    %97 = arith.addf %96, %94 : vector<4x256xf32>
    %cst_49 = arith.constant dense<0xFF800000> : vector<256xf32>
    %98 = vector.multi_reduction <maximumf>, %97, %cst_49 [0] : vector<4x256xf32> to vector<256xf32>
    %99 = vector.shape_cast %98 : vector<256xf32> to vector<1x256xf32>
    %100 = vector.broadcast %99 : vector<1x256xf32> to vector<4x256xf32>
    %101 = arith.subf %97, %100 : vector<4x256xf32>
    %102 = math.exp %101 : vector<4x256xf32>
    %cst_50 = arith.constant dense<0.000000e+00> : vector<256xf32>
    %103 = vector.multi_reduction <add>, %102, %cst_50 [0] : vector<4x256xf32> to vector<256xf32>
    %104 = vector.shape_cast %103 : vector<256xf32> to vector<1x256xf32>
    %105 = vector.broadcast %104 : vector<1x256xf32> to vector<4x256xf32>
    %106 = arith.divf %102, %105 : vector<4x256xf32>
    %c0_51 = arith.constant 0 : index
    %c0_52 = arith.constant 0 : index
    %c0_53 = arith.constant 0 : index
    %107 = vector.load %arg5[%c0_51, %c0_52, %c0_53] : memref<1x4x256xf32, #tpu.memory_space<vmem>>, vector<1x4x256xf32>
    %108 = vector.shape_cast %107 : vector<1x4x256xf32> to vector<4x256xf32>
    %109 = vector.shape_cast %106 : vector<4x256xf32> to vector<1x4x256xf32>
    tpu.vector_store %arg5[%c0_51, %c0_52, %c0_53], %109 {strides = array<i32>} : memref<1x4x256xf32, #tpu.memory_space<vmem>>, vector<1x4x256xf32>,
    return
  }
  func.func @transform_0(%arg0: i32) -> (i32, i32) {
    %c0_i32 = arith.constant 0 : i32
    %c0_i32_0 = arith.constant 0 : i32
    %c0_i32_1 = arith.constant 0 : i32
    return %c0_i32, %c0_i32_0 : i32, i32
  }
  func.func @transform_1(%arg0: i32) -> (i32, i32, i32) {
    %c0_i32 = arith.constant 0 : i32
    %c0_i32_0 = arith.constant 0 : i32
    %c0_i32_1 = arith.constant 0 : i32
    return %arg0, %c0_i32, %c0_i32_0 : i32, i32, i32
  }
  func.func @transform_2(%arg0: i32) -> (i32, i32, i32) {
    %c0_i32 = arith.constant 0 : i32
    %c0_i32_0 = arith.constant 0 : i32
    %c0_i32_1 = arith.constant 0 : i32
    return %arg0, %c0_i32, %c0_i32_0 : i32, i32, i32
  }
  func.func @transform_3(%arg0: i32) -> (i32, i32, i32) {
    %c0_i32 = arith.constant 0 : i32
    %c0_i32_0 = arith.constant 0 : i32
    %c0_i32_1 = arith.constant 0 : i32
    return %arg0, %c0_i32, %c0_i32_0 : i32, i32, i32
  }
  func.func @transform_4(%arg0: i32) -> (i32, i32, i32) {
    %c0_i32 = arith.constant 0 : i32
    %c0_i32_0 = arith.constant 0 : i32
    %c0_i32_1 = arith.constant 0 : i32
    return %arg0, %c0_i32, %c0_i32_0 : i32, i32, i32
  }
}

</mosaic_0001>

<llo_original>
// kernel: dense_crf.1
$region0: #{dense_crf.1}
  #allocation0 [shape = 'u32[]', space=smem, size = 0x4, offset = 0x4, fixed_abs, tag = 'smem constant byte address 0x4 - core index']
  #allocation1 [shape = 'u32[72,128]{1,0:T(1,128)}', space=vmem, size = 0x9000, scoped, tag = 'internal scratch']
  #allocation2 [shape = 'bf16[256,256]{1,0:T(8,128)(2,1)}', space=vmem, size = 0x20000, scoped, tag = 'scratch operand']
  #allocation3 [shape = 'f32[1,256]{1,0:T(1,128)}', space=vmem, size = 0x400, scoped, tag = 'scratch operand']
  %s0 = inlined_call_operand.vmem [shape: bf16[256,256], index: 0, kind: input, shape index: {}]
  %s1 = inlined_call_operand.vmem [shape: f32[2,4,256], index: 1, kind: input, shape index: {}]
  %s2 = inlined_call_operand.vmem [shape: f32[2,8,256], index: 2, kind: input, shape index: {}]
  %s3 = inlined_call_operand.vmem [shape: f32[2,256,1], index: 3, kind: input, shape index: {}]
  %s4 = inlined_call_operand.vmem [shape: f32[2,4,256], index: 4, kind: output, shape index: {}]
  %s5 = sld [smem:[#allocation0]]
  $region56: #{dense_crf.1} parent=0
    _
  %s7 = ssub.s32 1, %s5
  %s8 = scalar_select 0, %s7, %s5
  loop: start=0, step=1, limit=4
  $region2: #{dense_crf.1} parent=0 // loop_pre_header
    _
  $region3: #{dense_crf.1} parent=0 // loop_header
    %s10 = sphi 0, %s14
    %p11 = scmp.ge.s32.totalorder %s10, 4
    %s18 = sphi 0, %s18
    %s20 = sphi 0, %s18
    %s21 = sphi 0, %s20
    %s35 = sphi 0, %s21
    %s41 = sphi 0, %s43
    %s44 = sphi 0, %s41
    %s45 = sphi 0, %s44
    %s61 = sphi 0, %s45
    %s67 = sphi 0, %s69
    %s70 = sphi 0, %s67
    %s71 = sphi 0, %s70
    %s87 = sphi 0, %s71
    %s93 = sphi 0, %s95
    %s96 = sphi 0, %s93
    %s97 = sphi 0, %s96
    %s113 = sphi 0, %s97
    %s119 = sphi 0, %s121
    %s122 = sphi 0, %s119
    %s123 = sphi 0, %s122
    %s139 = sphi 0, %s123
  $region4: #{dense_crf.1} parent=0 // loop_header_branch
    %13 = sbr.rel (%p11) target = $region8
  $region5: #{dense_crf.1} parent=0 // loop_body
    %s15 = ssub.s32 %s10, 1
    %s16 = ssub.s32 %s10, 2
    %s17 = sadd.s32 %s10, 1
    %s19 = sadd.s32 %s18, 1
    %p22 = scmp.eq.s32.totalorder %s10, 1
    %p23 = scmp.ne.s32.totalorder %s18, %s20
    %p24 = scmp.eq.s32.totalorder %s10, 0
    %p25 = por %p23, %p24
    %p26 = scmp.ne.s32.totalorder %s18, %s20
    %p27 = scmp.eq.s32.totalorder %s15, 1
    %p28 = por %p26, %p27
    %p29 = scmp.ne.s32.totalorder %s20, %s21
    %p30 = scmp.eq.s32.totalorder %s15, 0
    %p31 = por %p29, %p30
    %p32 = scmp.ne.s32.totalorder %s20, %s21
    %p33 = scmp.eq.s32.totalorder %s16, 1
    %p34 = por %p32, %p33
    %p36 = scmp.ne.s32.totalorder %s21, %s35
    %p37 = scmp.eq.s32.totalorder %s16, 0
    %p38 = por %p36, %p37
    %s39 = ssub.s32 %s10, %s17
    %p40 = scmp.eq.s32.totalorder %s39, 0
    %s42 = sadd.s32 %s41, 1
    %s43 = scalar_select %p40, %s41, %s42
    %p46 = pneg %p40
    %p47 = scmp.eq.s32.totalorder %s10, 1
    %p48 = por %p46, %p47
    %p49 = scmp.ne.s32.totalorder %s41, %s44
    %p50 = scmp.eq.s32.totalorder %s10, 0
    %p51 = por %p49, %p50
    %p52 = scmp.ne.s32.totalorder %s41, %s44
    %p53 = scmp.eq.s32.totalorder %s15, 1
    %p54 = por %p52, %p53
    %p55 = scmp.ne.s32.totalorder %s44, %s45
    %p56 = scmp.eq.s32.totalorder %s15, 0
    %p57 = por %p55, %p56
    %p58 = scmp.ne.s32.totalorder %s44, %s45
    %p59 = scmp.eq.s32.totalorder %s16, 1
    %p60 = por %p58, %p59
    %p62 = scmp.ne.s32.totalorder %s45, %s61
    %p63 = scmp.eq.s32.totalorder %s16, 0
    %p64 = por %p62, %p63
    %s65 = ssub.s32 %s10, %s17
    %p66 = scmp.eq.s32.totalorder %s65, 0
    %s68 = sadd.s32 %s67, 1
    %s69 = scalar_select %p66, %s67, %s68
    %p72 = pneg %p66
    %p73 = scmp.eq.s32.totalorder %s10, 1
    %p74 = por %p72, %p73
    %p75 = scmp.ne.s32.totalorder %s67, %s70
    %p76 = scmp.eq.s32.totalorder %s10, 0
    %p77 = por %p75, %p76
    %p78 = scmp.ne.s32.totalorder %s67, %s70
    %p79 = scmp.eq.s32.totalorder %s15, 1
    %p80 = por %p78, %p79
    %p81 = scmp.ne.s32.totalorder %s70, %s71
    %p82 = scmp.eq.s32.totalorder %s15, 0
    %p83 = por %p81, %p82
    %p84 = scmp.ne.s32.totalorder %s70, %s71
    %p85 = scmp.eq.s32.totalorder %s16, 1
    %p86 = por %p84, %p85
    %p88 = scmp.ne.s32.totalorder %s71, %s87
    %p89 = scmp.eq.s32.totalorder %s16, 0
    %p90 = por %p88, %p89
    %s91 = ssub.s32 %s10, %s17
    %p92 = scmp.eq.s32.totalorder %s91, 0
    %s94 = sadd.s32 %s93, 1
    %s95 = scalar_select %p92, %s93, %s94
    %p98 = pneg %p92
    %p99 = scmp.eq.s32.totalorder %s10, 1
    %p100 = por %p98, %p99
    %p101 = scmp.ne.s32.totalorder %s93, %s96
    %p102 = scmp.eq.s32.totalorder %s10, 0
    %p103 = por %p101, %p102
    %p104 = scmp.ne.s32.totalorder %s93, %s96
    %p105 = scmp.eq.s32.totalorder %s15, 1
    %p106 = por %p104, %p105
    %p107 = scmp.ne.s32.totalorder %s96, %s97
    %p108 = scmp.eq.s32.totalorder %s15, 0
    %p109 = por %p107, %p108
    %p110 = scmp.ne.s32.totalorder %s96, %s97
    %p111 = scmp.eq.s32.totalorder %s16, 1
    %p112 = por %p110, %p111
    %p114 = scmp.ne.s32.totalorder %s97, %s113
    %p115 = scmp.eq.s32.totalorder %s16, 0
    %p116 = por %p114, %p115
    %s117 = ssub.s32 %s10, %s17
    %p118 = scmp.eq.s32.totalorder %s117, 0
    %s120 = sadd.s32 %s119, 1
    %s121 = scalar_select %p118, %s119, %s120
    %p124 = pneg %p118
    %p125 = scmp.eq.s32.totalorder %s10, 1
    %p126 = por %p124, %p125
    %p127 = scmp.ne.s32.totalorder %s119, %s122
    %p128 = scmp.eq.s32.totalorder %s10, 0
    %p129 = por %p127, %p128
    %p130 = scmp.ne.s32.totalorder %s119, %s122
    %p131 = scmp.eq.s32.totalorder %s15, 1
    %p132 = por %p130, %p131
    %p133 = scmp.ne.s32.totalorder %s122, %s123
    %p134 = scmp.eq.s32.totalorder %s15, 0
    %p135 = por %p133, %p134
    %p136 = scmp.ne.s32.totalorder %s122, %s123
    %p137 = scmp.eq.s32.totalorder %s16, 1
    %p138 = por %p136, %p137
    %p140 = scmp.ne.s32.totalorder %s123, %s139
    %p141 = scmp.eq.s32.totalorder %s16, 0
    %p142 = por %p140, %p141
    %p143 = scmp.le.s32.totalorder 1, %s10
    %p144 = scmp.lt.s32.totalorder %s10, 3
    %p145 = pnand %p143, %p144
    %p146 = pneg %p145
    // Predicated region
    $region9: #{dense_crf.1} parent=5 // pred_check
      _
    $region10: #{dense_crf.1} parent=5 // pred_check_branch
      %148 = sbr.rel (%p145) target = $region12
    $region11: #{dense_crf.1} parent=5 // pred_region
      %s149 = ssub.s32 %s10, 1
      // Predicated region
      $region13: #{dense_crf.1} parent=11 // pred_check
        %p150 = pneg %p31
      $region14: #{dense_crf.1} parent=11 // pred_check_branch
        %152 = sbr.rel (%p150) target = $region16
      $region15: #{dense_crf.1} parent=11 // pred_region
        _
      $region16: #{dense_crf.1} parent=11 // pred_fallthru
        _
    $region12: #{dense_crf.1} parent=5 // pred_fallthru
      _
    %p153 = scmp.lt.s32.totalorder %s10, 2
    // Predicated region
    $region17: #{dense_crf.1} parent=5 // pred_check
      %p154 = pneg %p153
    $region18: #{dense_crf.1} parent=5 // pred_check_branch
      %156 = sbr.rel (%p154) target = $region20
    $region19: #{dense_crf.1} parent=5 // pred_region
      // Predicated region
      $region21: #{dense_crf.1} parent=19 // pred_check
        %p157 = pneg %p51
      $region22: #{dense_crf.1} parent=19 // pred_check_branch
        %159 = sbr.rel (%p157) target = $region24
      $region23: #{dense_crf.1} parent=19 // pred_region
        %p160 = scmp.lt.s32.totalorder %s10, 1
        %s161 = scalar_select %p160, %s10, 1
        %s162 = smul.addr %s161, 2
        %s163 = smul.addr %s162, 4
        %s164 = scalar_lea.vmem %s1, %s163
      $region24: #{dense_crf.1} parent=19 // pred_fallthru
        _
      // Predicated region
      $region25: #{dense_crf.1} parent=19 // pred_check
        %p165 = pneg %p77
      $region26: #{dense_crf.1} parent=19 // pred_check_branch
        %167 = sbr.rel (%p165) target = $region28
      $region27: #{dense_crf.1} parent=19 // pred_region
        %p168 = scmp.lt.s32.totalorder %s10, 1
        %s169 = scalar_select %p168, %s10, 1
        %s170 = smul.addr %s169, 2
        %s171 = smul.addr %s170, 8
        %s172 = scalar_lea.vmem %s2, %s171
      $region28: #{dense_crf.1} parent=19 // pred_fallthru
        _
      // Predicated region
      $region29: #{dense_crf.1} parent=19 // pred_check
        %p173 = pneg %p103
      $region30: #{dense_crf.1} parent=19 // pred_check_branch
        %175 = sbr.rel (%p173) target = $region32
      $region31: #{dense_crf.1} parent=19 // pred_region
        %p176 = scmp.lt.s32.totalorder %s10, 1
        %s177 = scalar_select %p176, %s10, 1
        %s178 = smul.addr %s177, 32
        %s179 = smul.addr %s178, 8
        %s180 = scalar_lea.vmem %s3, %s179
      $region32: #{dense_crf.1} parent=19 // pred_fallthru
        _
    $region20: #{dense_crf.1} parent=5 // pred_fallthru
      _
    %p181 = scmp.le.s32.totalorder 1, %s10
    %p182 = scmp.lt.s32.totalorder %s10, 3
    %p183 = pnand %p181, %p182
    %p184 = pneg %p183
    // Predicated region
    $region33: #{dense_crf.1} parent=5 // pred_check
      _
    $region34: #{dense_crf.1} parent=5 // pred_check_branch
      %186 = sbr.rel (%p183) target = $region36
    $region35: #{dense_crf.1} parent=5 // pred_region
      %s187 = ssub.s32 %s10, 1
      %p188 = pneg %p31
      %p189 = pneg %p28
      %p190 = scmp.lt.s32.totalorder %s15, 1
      %s191 = scalar_select %p190, %s15, 1
      %s192 = smul.addr %s191, 2
      %s193 = smul.addr %s192, 4
      %s194 = scalar_lea.vmem %s1, %s193
      %p195 = pneg %p57
      %p196 = pneg %p54
      %p197 = scmp.lt.s32.totalorder %s15, 1
      %s198 = scalar_select %p197, %s15, 1
      %s199 = smul.addr %s198, 2
      %s200 = smul.addr %s199, 8
      %s201 = scalar_lea.vmem %s2, %s200
      %p202 = pneg %p83
      %p203 = pneg %p80
      %p204 = scmp.lt.s32.totalorder %s15, 1
      %s205 = scalar_select %p204, %s15, 1
      %s206 = smul.addr %s205, 32
      %s207 = smul.addr %s206, 8
      %s208 = scalar_lea.vmem %s3, %s207
      %p209 = pneg %p109
      %p210 = pneg %p106
      %p211 = pneg %p135
      %p212 = pneg %p132
      %p213 = scmp.lt.s32.totalorder %s15, 1
      %s214 = scalar_select %p213, %s15, 1
      %s215 = smul.addr %s214, 2
      %s216 = smul.addr %s215, 4
      %s217 = scalar_lea.vmem %s4, %s216
      %p218 = scmp.lt.s32.totalorder %s15, 1
      %s219 = scalar_select %p218, %s15, 1
      %s220 = smul.addr %s219, 2
      %s221 = smul.addr %s220, 4
      %s222 = scalar_lea.vmem %s1, %s221
      %p223 = scmp.lt.s32.totalorder %s15, 1
      %s224 = scalar_select %p223, %s15, 1
      %s225 = smul.addr %s224, 2
      %s226 = smul.addr %s225, 8
      %s227 = scalar_lea.vmem %s2, %s226
      %p228 = scmp.lt.s32.totalorder %s15, 1
      %s229 = scalar_select %p228, %s15, 1
      %s230 = smul.addr %s229, 32
      %s231 = smul.addr %s230, 8
      %s232 = scalar_lea.vmem %s3, %s231
      %p233 = scmp.lt.s32.totalorder %s15, 1
      %s234 = scalar_select %p233, %s15, 1
      %s235 = smul.addr %s234, 2
      %s236 = smul.addr %s235, 4
      %s237 = scalar_lea.vmem %s4, %s236
      %v238 = vld [vmem:[%s227] sm:$0xff]
      %v239 = vld [vmem:[%s227 + $0x8] sm:$0xff]
      %v240 = vmul.f32 %v238, %v238
      %v241 = vmul.f32 %v239, %v239
      %v242 = vrot.slane %v240, 4
      %v243 = vadd.f32 %v240, %v242
      %v244 = vrot.slane %v243, 2
      %v245 = vadd.f32 %v243, %v244
      %v246 = vrot.slane %v245, 1
      %v247 = vadd.f32 %v245, %v246
      %v248 = vrot.slane %v241, 4
      %v249 = vadd.f32 %v241, %v248
      %v250 = vrot.slane %v249, 2
      %v251 = vadd.f32 %v249, %v250
      %v252 = vrot.slane %v251, 1
      %v253 = vadd.f32 %v251, %v252
      %v254 = vmul.f32 %v247, -0.5
      %v255 = vmul.f32 %v253, -0.5
      %v256 = vlaneseq
      %vm257 = vcmp.ge.s32.totalorder %v256, 0
      %vm258 = vcmp.lt.s32.totalorder %v256, 256
      %vm259 = vmand %vm257, %vm258
      %260 = vst.msk [vmem:[#allocation3] sm:$0x3] %vm259, 0.0
      %v261 = vld [vmem:[%s227] sm:$0xff]
      %v262 = vld [vmem:[%s227 + $0x8] sm:$0xff]
      %v263 = vld [vmem:[%s232] sm:$0xff]
      %v264 = vld [vmem:[%s232 + $0x8] sm:$0xff]
      %v265 = vld [vmem:[%s232 + $0x10] sm:$0xff]
      %v266 = vld [vmem:[%s232 + $0x18] sm:$0xff]
      %v267 = vld [vmem:[%s232 + $0x20] sm:$0xff]
      %v268 = vld [vmem:[%s232 + $0x28] sm:$0xff]
      %v269 = vld [vmem:[%s232 + $0x30] sm:$0xff]
      %v270 = vld [vmem:[%s232 + $0x38] sm:$0xff]
      %v271 = vld [vmem:[%s232 + $0x40] sm:$0xff]
      %v272 = vld [vmem:[%s232 + $0x48] sm:$0xff]
      %v273 = vld [vmem:[%s232 + $0x50] sm:$0xff]
      %v274 = vld [vmem:[%s232 + $0x58] sm:$0xff]
      %v275 = vld [vmem:[%s232 + $0x60] sm:$0xff]
      %v276 = vld [vmem:[%s232 + $0x68] sm:$0xff]
      %v277 = vld [vmem:[%s232 + $0x70] sm:$0xff]
      %v278 = vld [vmem:[%s232 + $0x78] sm:$0xff]
      %v279 = vld [vmem:[%s232 + $0x80] sm:$0xff]
      %v280 = vld [vmem:[%s232 + $0x88] sm:$0xff]
      %v281 = vld [vmem:[%s232 + $0x90] sm:$0xff]
      %v282 = vld [vmem:[%s232 + $0x98] sm:$0xff]
      %v283 = vld [vmem:[%s232 + $0xa0] sm:$0xff]
      %v284 = vld [vmem:[%s232 + $0xa8] sm:$0xff]
      %v285 = vld [vmem:[%s232 + $0xb0] sm:$0xff]
      %v286 = vld [vmem:[%s232 + $0xb8] sm:$0xff]
      %v287 = vld [vmem:[%s232 + $0xc0] sm:$0xff]
      %v288 = vld [vmem:[%s232 + $0xc8] sm:$0xff]
      %v289 = vld [vmem:[%s232 + $0xd0] sm:$0xff]
      %v290 = vld [vmem:[%s232 + $0xd8] sm:$0xff]
      %v291 = vld [vmem:[%s232 + $0xe0] sm:$0xff]
      %v292 = vld [vmem:[%s232 + $0xe8] sm:$0xff]
      %v293 = vld [vmem:[%s232 + $0xf0] sm:$0xff]
      %v294 = vld [vmem:[%s232 + $0xf8] sm:$0xff]
      %296 = vset.pattern.permute.xlu0 0
      %297 = vperm.xlu0 %296, %v263
      %v298 = vpop.permute.xlu0 %297
      %301 = vset.pattern.permute.xlu0 0
      %302 = vperm.xlu0 %301, %v264
      %v303 = vpop.permute.xlu0 %302
      %306 = vset.pattern.permute.xlu0 0
      %307 = vperm.xlu0 %306, %v265
      %v308 = vpop.permute.xlu0 %307
      %311 = vset.pattern.permute.xlu0 0
      %312 = vperm.xlu0 %311, %v266
      %v313 = vpop.permute.xlu0 %312
      %316 = vset.pattern.permute.xlu0 0
      %317 = vperm.xlu0 %316, %v267
      %v318 = vpop.permute.xlu0 %317
      %321 = vset.pattern.permute.xlu0 0
      %322 = vperm.xlu0 %321, %v268
      %v323 = vpop.permute.xlu0 %322
      %326 = vset.pattern.permute.xlu0 0
      %327 = vperm.xlu0 %326, %v269
      %v328 = vpop.permute.xlu0 %327
      %331 = vset.pattern.permute.xlu0 0
      %332 = vperm.xlu0 %331, %v270
      %v333 = vpop.permute.xlu0 %332
      %336 = vset.pattern.permute.xlu0 0
      %337 = vperm.xlu0 %336, %v271
      %v338 = vpop.permute.xlu0 %337
      %341 = vset.pattern.permute.xlu0 0
      %342 = vperm.xlu0 %341, %v272
      %v343 = vpop.permute.xlu0 %342
      %346 = vset.pattern.permute.xlu0 0
      %347 = vperm.xlu0 %346, %v273
      %v348 = vpop.permute.xlu0 %347
      %351 = vset.pattern.permute.xlu0 0
      %352 = vperm.xlu0 %351, %v274
      %v353 = vpop.permute.xlu0 %352
      %356 = vset.pattern.permute.xlu0 0
      %357 = vperm.xlu0 %356, %v275
      %v358 = vpop.permute.xlu0 %357
      %361 = vset.pattern.permute.xlu0 0
      %362 = vperm.xlu0 %361, %v276
      %v363 = vpop.permute.xlu0 %362
      %366 = vset.pattern.permute.xlu0 0
      %367 = vperm.xlu0 %366, %v277
      %v368 = vpop.permute.xlu0 %367
      %371 = vset.pattern.permute.xlu0 0
      %372 = vperm.xlu0 %371, %v278
      %v373 = vpop.permute.xlu0 %372
      %376 = vset.pattern.permute.xlu0 0
      %377 = vperm.xlu0 %376, %v279
      %v378 = vpop.permute.xlu0 %377
      %381 = vset.pattern.permute.xlu0 0
      %382 = vperm.xlu0 %381, %v280
      %v383 = vpop.permute.xlu0 %382
      %386 = vset.pattern.permute.xlu0 0
      %387 = vperm.xlu0 %386, %v281
      %v388 = vpop.permute.xlu0 %387
      %391 = vset.pattern.permute.xlu0 0
      %392 = vperm.xlu0 %391, %v282
      %v393 = vpop.permute.xlu0 %392
      %396 = vset.pattern.permute.xlu0 0
      %397 = vperm.xlu0 %396, %v283
      %v398 = vpop.permute.xlu0 %397
      %401 = vset.pattern.permute.xlu0 0
      %402 = vperm.xlu0 %401, %v284
      %v403 = vpop.permute.xlu0 %402
      %406 = vset.pattern.permute.xlu0 0
      %407 = vperm.xlu0 %406, %v285
      %v408 = vpop.permute.xlu0 %407
      %411 = vset.pattern.permute.xlu0 0
      %412 = vperm.xlu0 %411, %v286
      %v413 = vpop.permute.xlu0 %412
      %416 = vset.pattern.permute.xlu0 0
      %417 = vperm.xlu0 %416, %v287
      %v418 = vpop.permute.xlu0 %417
      %421 = vset.pattern.permute.xlu0 0
      %422 = vperm.xlu0 %421, %v288
      %v423 = vpop.permute.xlu0 %422
      %426 = vset.pattern.permute.xlu0 0
      %427 = vperm.xlu0 %426, %v289
      %v428 = vpop.permute.xlu0 %427
      %431 = vset.pattern.permute.xlu0 0
      %432 = vperm.xlu0 %431, %v290
      %v433 = vpop.permute.xlu0 %432
      %436 = vset.pattern.permute.xlu0 0
      %437 = vperm.xlu0 %436, %v291
      %v438 = vpop.permute.xlu0 %437
      %441 = vset.pattern.permute.xlu0 0
      %442 = vperm.xlu0 %441, %v292
      %v443 = vpop.permute.xlu0 %442
      %446 = vset.pattern.permute.xlu0 0
      %447 = vperm.xlu0 %446, %v293
      %v448 = vpop.permute.xlu0 %447
      %451 = vset.pattern.permute.xlu0 0
      %452 = vperm.xlu0 %451, %v294
      %v453 = vpop.permute.xlu0 %452
      %455 = vxpose.xlu0.b32.start [1/16] %v261, 128
      %456 = vxpose.xlu0.b32.cont [2/16] 0.0, 128
      %457 = vxpose.xlu0.b32.cont [3/16] 0.0, 128
      %458 = vxpose.xlu0.b32.cont [4/16] 0.0, 128
      %459 = vxpose.xlu0.b32.cont [5/16] 0.0, 128
      %460 = vxpose.xlu0.b32.cont [6/16] 0.0, 128
      %461 = vxpose.xlu0.b32.cont [7/16] 0.0, 128
      %462 = vxpose.xlu0.b32.cont [8/16] 0.0, 128
      %463 = vxpose.xlu0.b32.cont [9/16] 0.0, 128
      %464 = vxpose.xlu0.b32.cont [10/16] 0.0, 128
      %465 = vxpose.xlu0.b32.cont [11/16] 0.0, 128
      %466 = vxpose.xlu0.b32.cont [12/16] 0.0, 128
      %467 = vxpose.xlu0.b32.cont [13/16] 0.0, 128
      %468 = vxpose.xlu0.b32.cont [14/16] 0.0, 128
      %469 = vxpose.xlu0.b32.cont [15/16] 0.0, 128
      %470 = vxpose.xlu0.b32.end [16/16] 0.0, 128
      %v471 = vpop.trf.xlu0
      %v472 = vpop.trf.xlu0
      %v473 = vpop.trf.xlu0
      %v474 = vpop.trf.xlu0
      %v475 = vpop.trf.xlu0
      %v476 = vpop.trf.xlu0
      %v477 = vpop.trf.xlu0
      %v478 = vpop.trf.xlu0
      %v479 = vpop.trf.xlu0
      %v480 = vpop.trf.xlu0
      %v481 = vpop.trf.xlu0
      %v482 = vpop.trf.xlu0
      %v483 = vpop.trf.xlu0
      %v484 = vpop.trf.xlu0
      %v485 = vpop.trf.xlu0
      %v486 = vpop.trf.xlu0
      %487 = vxpose.xlu0.b32.start [1/16] %v262, 128
      %488 = vxpose.xlu0.b32.cont [2/16] 0.0, 128
      %489 = vxpose.xlu0.b32.cont [3/16] 0.0, 128
      %490 = vxpose.xlu0.b32.cont [4/16] 0.0, 128
      %491 = vxpose.xlu0.b32.cont [5/16] 0.0, 128
      %492 = vxpose.xlu0.b32.cont [6/16] 0.0, 128
      %493 = vxpose.xlu0.b32.cont [7/16] 0.0, 128
      %494 = vxpose.xlu0.b32.cont [8/16] 0.0, 128
      %495 = vxpose.xlu0.b32.cont [9/16] 0.0, 128
      %496 = vxpose.xlu0.b32.cont [10/16] 0.0, 128
      %497 = vxpose.xlu0.b32.cont [11/16] 0.0, 128
      %498 = vxpose.xlu0.b32.cont [12/16] 0.0, 128
      %499 = vxpose.xlu0.b32.cont [13/16] 0.0, 128
      %500 = vxpose.xlu0.b32.cont [14/16] 0.0, 128
      %501 = vxpose.xlu0.b32.cont [15/16] 0.0, 128
      %502 = vxpose.xlu0.b32.end [16/16] 0.0, 128
      %v503 = vpop.trf.xlu0
      %v504 = vpop.trf.xlu0
      %v505 = vpop.trf.xlu0
      %v506 = vpop.trf.xlu0
      %v507 = vpop.trf.xlu0
      %v508 = vpop.trf.xlu0
      %v509 = vpop.trf.xlu0
      %v510 = vpop.trf.xlu0
      %v511 = vpop.trf.xlu0
      %v512 = vpop.trf.xlu0
      %v513 = vpop.trf.xlu0
      %v514 = vpop.trf.xlu0
      %v515 = vpop.trf.xlu0
      %v516 = vpop.trf.xlu0
      %v517 = vpop.trf.xlu0
      %v518 = vpop.trf.xlu0
      %vm519 = vcmask 64512
      %v521 = vsel %vm519, %v471, 0
      %v524 = vsel %vm519, %v472, 0
      %v527 = vsel %vm519, %v473, 0
      %v530 = vsel %vm519, %v474, 0
      %v533 = vsel %vm519, %v475, 0
      %v536 = vsel %vm519, %v476, 0
      %v539 = vsel %vm519, %v477, 0
      %v542 = vsel %vm519, %v478, 0
      %v545 = vsel %vm519, %v479, 0
      %v548 = vsel %vm519, %v480, 0
      %v551 = vsel %vm519, %v481, 0
      %v554 = vsel %vm519, %v482, 0
      %v557 = vsel %vm519, %v483, 0
      %v560 = vsel %vm519, %v484, 0
      %v563 = vsel %vm519, %v485, 0
      %v566 = vsel %vm519, %v486, 0
      %v569 = vsel %vm519, %v503, 0
      %v572 = vsel %vm519, %v504, 0
      %v575 = vsel %vm519, %v505, 0
      %v578 = vsel %vm519, %v506, 0
      %v581 = vsel %vm519, %v507, 0
      %v584 = vsel %vm519, %v508, 0
      %v587 = vsel %vm519, %v509, 0
      %v590 = vsel %vm519, %v510, 0
      %v593 = vsel %vm519, %v511, 0
      %v596 = vsel %vm519, %v512, 0
      %v599 = vsel %vm519, %v513, 0
      %v602 = vsel %vm519, %v514, 0
      %v605 = vsel %vm519, %v515, 0
      %v608 = vsel %vm519, %v516, 0
      %v611 = vsel %vm519, %v517, 0
      %v614 = vsel %vm519, %v518, 0
      %616 = vmatpush.msra.mxu0 0.0
      %617 = vmatpush.msra.mxu0 0.0
      %618 = vmatpush.msra.mxu0 0.0
      %619 = vmatpush.msra.mxu0 0.0
      %620 = vmatpush.msra.mxu0 0.0
      %621 = vmatpush.msra.mxu0 0.0
      %622 = vmatpush.msra.mxu0 0.0
      %623 = vmatpush.msra.mxu0 0.0
      %624 = vmatpush.msra.mxu0 0.0
      %625 = vmatpush.msra.mxu0 0.0
      %626 = vmatpush.msra.mxu0 0.0
      %627 = vmatpush.msra.mxu0 0.0
      %628 = vmatpush.msra.mxu0 0.0
      %629 = vmatpush.msra.mxu0 0.0
      %630 = vmatpush.msra.mxu0 0.0
      %631 = vmatpush.msra.mxu0 %v238
      %632 = vmatmul.f32.gmra.mxu0 %v521
      %v633 = vpop.f32.mrf.mxu0
      %v634 = vadd.f32 %v298, %v633
      %635 = vmatmul.f32.gmra.mxu0 %v524
      %v636 = vpop.f32.mrf.mxu0
      %v637 = vadd.f32 %v303, %v636
      %638 = vmatmul.f32.gmra.mxu0 %v527
      %v639 = vpop.f32.mrf.mxu0
      %v640 = vadd.f32 %v308, %v639
      %641 = vmatmul.f32.gmra.mxu0 %v530
      %v642 = vpop.f32.mrf.mxu0
      %v643 = vadd.f32 %v313, %v642
      %644 = vmatmul.f32.gmra.mxu0 %v533
      %v645 = vpop.f32.mrf.mxu0
      %v646 = vadd.f32 %v318, %v645
      %647 = vmatmul.f32.gmra.mxu0 %v536
      %v648 = vpop.f32.mrf.mxu0
      %v649 = vadd.f32 %v323, %v648
      %650 = vmatmul.f32.gmra.mxu0 %v539
      %v651 = vpop.f32.mrf.mxu0
      %v652 = vadd.f32 %v328, %v651
      %653 = vmatmul.f32.gmra.mxu0 %v542
      %v654 = vpop.f32.mrf.mxu0
      %v655 = vadd.f32 %v333, %v654
      %656 = vmatmul.f32.gmra.mxu0 %v545
      %v657 = vpop.f32.mrf.mxu0
      %v658 = vadd.f32 %v338, %v657
      %659 = vmatmul.f32.gmra.mxu0 %v548
      %v660 = vpop.f32.mrf.mxu0
      %v661 = vadd.f32 %v343, %v660
      %662 = vmatmul.f32.gmra.mxu0 %v551
      %v663 = vpop.f32.mrf.mxu0
      %v664 = vadd.f32 %v348, %v663
      %665 = vmatmul.f32.gmra.mxu0 %v554
      %v666 = vpop.f32.mrf.mxu0
      %v667 = vadd.f32 %v353, %v666
      %668 = vmatmul.f32.gmra.mxu0 %v557
      %v669 = vpop.f32.mrf.mxu0
      %v670 = vadd.f32 %v358, %v669
      %671 = vmatmul.f32.gmra.mxu0 %v560
      %v672 = vpop.f32.mrf.mxu0
      %v673 = vadd.f32 %v363, %v672
      %674 = vmatmul.f32.gmra.mxu0 %v563
      %v675 = vpop.f32.mrf.mxu0
      %v676 = vadd.f32 %v368, %v675
      %677 = vmatmul.f32.gmra.mxu0 %v566
      %v678 = vpop.f32.mrf.mxu0
      %v679 = vadd.f32 %v373, %v678
      %680 = vmatmul.f32.gmra.mxu0 %v569
      %v681 = vpop.f32.mrf.mxu0
      %v682 = vadd.f32 %v378, %v681
      %683 = vmatmul.f32.gmra.mxu0 %v572
      %v684 = vpop.f32.mrf.mxu0
      %v685 = vadd.f32 %v383, %v684
      %686 = vmatmul.f32.gmra.mxu0 %v575
      %v687 = vpop.f32.mrf.mxu0
      %v688 = vadd.f32 %v388, %v687
      %689 = vmatmul.f32.gmra.mxu0 %v578
      %v690 = vpop.f32.mrf.mxu0
      %v691 = vadd.f32 %v393, %v690
      %692 = vmatmul.f32.gmra.mxu0 %v581
      %v693 = vpop.f32.mrf.mxu0
      %v694 = vadd.f32 %v398, %v693
      %695 = vmatmul.f32.gmra.mxu0 %v584
      %v696 = vpop.f32.mrf.mxu0
      %v697 = vadd.f32 %v403, %v696
      %698 = vmatmul.f32.gmra.mxu0 %v587
      %v699 = vpop.f32.mrf.mxu0
      %v700 = vadd.f32 %v408, %v699
      %701 = vmatmul.f32.gmra.mxu0 %v590
      %v702 = vpop.f32.mrf.mxu0
      %v703 = vadd.f32 %v413, %v702
      %704 = vmatmul.f32.gmra.mxu0 %v593
      %v705 = vpop.f32.mrf.mxu0
      %v706 = vadd.f32 %v418, %v705
      %707 = vmatmul.f32.gmra.mxu0 %v596
      %v708 = vpop.f32.mrf.mxu0
      %v709 = vadd.f32 %v423, %v708
      %710 = vmatmul.f32.gmra.mxu0 %v599
      %v711 = vpop.f32.mrf.mxu0
      %v712 = vadd.f32 %v428, %v711
      %713 = vmatmul.f32.gmra.mxu0 %v602
      %v714 = vpop.f32.mrf.mxu0
      %v715 = vadd.f32 %v433, %v714
      %716 = vmatmul.f32.gmra.mxu0 %v605
      %v717 = vpop.f32.mrf.mxu0
      %v718 = vadd.f32 %v438, %v717
      %719 = vmatmul.f32.gmra.mxu0 %v608
      %v720 = vpop.f32.mrf.mxu0
      %v721 = vadd.f32 %v443, %v720
      %722 = vmatmul.f32.gmra.mxu0 %v611
      %v723 = vpop.f32.mrf.mxu0
      %v724 = vadd.f32 %v448, %v723
      %725 = vmatmul.f32.gmra.mxu0 %v614
      %v726 = vpop.f32.mrf.mxu0
      %v727 = vadd.f32 %v453, %v726
      %728 = vdwg.mxu0
      %729 = vmatpush.msra.mxu0 0.0
      %730 = vmatpush.msra.mxu0 0.0
      %731 = vmatpush.msra.mxu0 0.0
      %732 = vmatpush.msra.mxu0 0.0
      %733 = vmatpush.msra.mxu0 0.0
      %734 = vmatpush.msra.mxu0 0.0
      %735 = vmatpush.msra.mxu0 0.0
      %736 = vmatpush.msra.mxu0 0.0
      %737 = vmatpush.msra.mxu0 0.0
      %738 = vmatpush.msra.mxu0 0.0
      %739 = vmatpush.msra.mxu0 0.0
      %740 = vmatpush.msra.mxu0 0.0
      %741 = vmatpush.msra.mxu0 0.0
      %742 = vmatpush.msra.mxu0 0.0
      %743 = vmatpush.msra.mxu0 0.0
      %744 = vmatpush.msra.mxu0 %v239
      %745 = vmatmul.f32.gmra.mxu0 %v521
      %v746 = vpop.f32.mrf.mxu0
      %v747 = vadd.f32 %v298, %v746
      %748 = vmatmul.f32.gmra.mxu0 %v524
      %v749 = vpop.f32.mrf.mxu0
      %v750 = vadd.f32 %v303, %v749
      %751 = vmatmul.f32.gmra.mxu0 %v527
      %v752 = vpop.f32.mrf.mxu0
      %v753 = vadd.f32 %v308, %v752
      %754 = vmatmul.f32.gmra.mxu0 %v530
      %v755 = vpop.f32.mrf.mxu0
      %v756 = vadd.f32 %v313, %v755
      %757 = vmatmul.f32.gmra.mxu0 %v533
      %v758 = vpop.f32.mrf.mxu0
      %v759 = vadd.f32 %v318, %v758
      %760 = vmatmul.f32.gmra.mxu0 %v536
      %v761 = vpop.f32.mrf.mxu0
      %v762 = vadd.f32 %v323, %v761
      %763 = vmatmul.f32.gmra.mxu0 %v539
      %v764 = vpop.f32.mrf.mxu0
      %v765 = vadd.f32 %v328, %v764
      %766 = vmatmul.f32.gmra.mxu0 %v542
      %v767 = vpop.f32.mrf.mxu0
      %v768 = vadd.f32 %v333, %v767
      %769 = vmatmul.f32.gmra.mxu0 %v545
      %v770 = vpop.f32.mrf.mxu0
      %v771 = vadd.f32 %v338, %v770
      %772 = vmatmul.f32.gmra.mxu0 %v548
      %v773 = vpop.f32.mrf.mxu0
      %v774 = vadd.f32 %v343, %v773
      %775 = vmatmul.f32.gmra.mxu0 %v551
      %v776 = vpop.f32.mrf.mxu0
      %v777 = vadd.f32 %v348, %v776
      %778 = vmatmul.f32.gmra.mxu0 %v554
      %v779 = vpop.f32.mrf.mxu0
      %v780 = vadd.f32 %v353, %v779
      %781 = vmatmul.f32.gmra.mxu0 %v557
      %v782 = vpop.f32.mrf.mxu0
      %v783 = vadd.f32 %v358, %v782
      %784 = vmatmul.f32.gmra.mxu0 %v560
      %v785 = vpop.f32.mrf.mxu0
      %v786 = vadd.f32 %v363, %v785
      %787 = vmatmul.f32.gmra.mxu0 %v563
      %v788 = vpop.f32.mrf.mxu0
      %v789 = vadd.f32 %v368, %v788
      %790 = vmatmul.f32.gmra.mxu0 %v566
      %v791 = vpop.f32.mrf.mxu0
      %v792 = vadd.f32 %v373, %v791
      %793 = vmatmul.f32.gmra.mxu0 %v569
      %v794 = vpop.f32.mrf.mxu0
      %v795 = vadd.f32 %v378, %v794
      %796 = vmatmul.f32.gmra.mxu0 %v572
      %v797 = vpop.f32.mrf.mxu0
      %v798 = vadd.f32 %v383, %v797
      %799 = vmatmul.f32.gmra.mxu0 %v575
      %v800 = vpop.f32.mrf.mxu0
      %v801 = vadd.f32 %v388, %v800
      %802 = vmatmul.f32.gmra.mxu0 %v578
      %v803 = vpop.f32.mrf.mxu0
      %v804 = vadd.f32 %v393, %v803
      %805 = vmatmul.f32.gmra.mxu0 %v581
      %v806 = vpop.f32.mrf.mxu0
      %v807 = vadd.f32 %v398, %v806
      %808 = vmatmul.f32.gmra.mxu0 %v584
      %v809 = vpop.f32.mrf.mxu0
      %v810 = vadd.f32 %v403, %v809
      %811 = vmatmul.f32.gmra.mxu0 %v587
      %v812 = vpop.f32.mrf.mxu0
      %v813 = vadd.f32 %v408, %v812
      %814 = vmatmul.f32.gmra.mxu0 %v590
      %v815 = vpop.f32.mrf.mxu0
      %v816 = vadd.f32 %v413, %v815
      %817 = vmatmul.f32.gmra.mxu0 %v593
      %v818 = vpop.f32.mrf.mxu0
      %v819 = vadd.f32 %v418, %v818
      %820 = vmatmul.f32.gmra.mxu0 %v596
      %v821 = vpop.f32.mrf.mxu0
      %v822 = vadd.f32 %v423, %v821
      %823 = vmatmul.f32.gmra.mxu0 %v599
      %v824 = vpop.f32.mrf.mxu0
      %v825 = vadd.f32 %v428, %v824
      %826 = vmatmul.f32.gmra.mxu0 %v602
      %v827 = vpop.f32.mrf.mxu0
      %v828 = vadd.f32 %v433, %v827
      %829 = vmatmul.f32.gmra.mxu0 %v605
      %v830 = vpop.f32.mrf.mxu0
      %v831 = vadd.f32 %v438, %v830
      %832 = vmatmul.f32.gmra.mxu0 %v608
      %v833 = vpop.f32.mrf.mxu0
      %v834 = vadd.f32 %v443, %v833
      %835 = vmatmul.f32.gmra.mxu0 %v611
      %v836 = vpop.f32.mrf.mxu0
      %v837 = vadd.f32 %v448, %v836
      %838 = vmatmul.f32.gmra.mxu0 %v614
      %v839 = vpop.f32.mrf.mxu0
      %v840 = vadd.f32 %v453, %v839
      %841 = vdwg.mxu0
      %v842 = vadd.f32 %v634, %v254
      %v843 = vadd.f32 %v747, %v255
      %v844 = vadd.f32 %v637, %v254
      %v845 = vadd.f32 %v750, %v255
      %v846 = vadd.f32 %v640, %v254
      %v847 = vadd.f32 %v753, %v255
      %v848 = vadd.f32 %v643, %v254
      %v849 = vadd.f32 %v756, %v255
      %v850 = vadd.f32 %v646, %v254
      %v851 = vadd.f32 %v759, %v255
      %v852 = vadd.f32 %v649, %v254
      %v853 = vadd.f32 %v762, %v255
      %v854 = vadd.f32 %v652, %v254
      %v855 = vadd.f32 %v765, %v255
      %v856 = vadd.f32 %v655, %v254
      %v857 = vadd.f32 %v768, %v255
      %v858 = vadd.f32 %v658, %v254
      %v859 = vadd.f32 %v771, %v255
      %v860 = vadd.f32 %v661, %v254
      %v861 = vadd.f32 %v774, %v255
      %v862 = vadd.f32 %v664, %v254
      %v863 = vadd.f32 %v777, %v255
      %v864 = vadd.f32 %v667, %v254
      %v865 = vadd.f32 %v780, %v255
      %v866 = vadd.f32 %v670, %v254
      %v867 = vadd.f32 %v783, %v255
      %v868 = vadd.f32 %v673, %v254
      %v869 = vadd.f32 %v786, %v255
      %v870 = vadd.f32 %v676, %v254
      %v871 = vadd.f32 %v789, %v255
      %v872 = vadd.f32 %v679, %v254
      %v873 = vadd.f32 %v792, %v255
      %v874 = vadd.f32 %v682, %v254
      %v875 = vadd.f32 %v795, %v255
      %v876 = vadd.f32 %v685, %v254
      %v877 = vadd.f32 %v798, %v255
      %v878 = vadd.f32 %v688, %v254
      %v879 = vadd.f32 %v801, %v255
      %v880 = vadd.f32 %v691, %v254
      %v881 = vadd.f32 %v804, %v255
      %v882 = vadd.f32 %v694, %v254
      %v883 = vadd.f32 %v807, %v255
      %v884 = vadd.f32 %v697, %v254
      %v885 = vadd.f32 %v810, %v255
      %v886 = vadd.f32 %v700, %v254
      %v887 = vadd.f32 %v813, %v255
      %v888 = vadd.f32 %v703, %v254
      %v889 = vadd.f32 %v816, %v255
      %v890 = vadd.f32 %v706, %v254
      %v891 = vadd.f32 %v819, %v255
      %v892 = vadd.f32 %v709, %v254
      %v893 = vadd.f32 %v822, %v255
      %v894 = vadd.f32 %v712, %v254
      %v895 = vadd.f32 %v825, %v255
      %v896 = vadd.f32 %v715, %v254
      %v897 = vadd.f32 %v828, %v255
      %v898 = vadd.f32 %v718, %v254
      %v899 = vadd.f32 %v831, %v255
      %v900 = vadd.f32 %v721, %v254
      %v901 = vadd.f32 %v834, %v255
      %v902 = vadd.f32 %v724, %v254
      %v903 = vadd.f32 %v837, %v255
      %v904 = vadd.f32 %v727, %v254
      %v905 = vadd.f32 %v840, %v255
      %v906 = vmul.f32 %v842, 1.442695
      %v907 = vpow.pop %v906
      %v908 = vmul.f32 %v843, 1.442695
      %v909 = vpow.pop %v908
      %v910 = vmul.f32 %v844, 1.442695
      %v911 = vpow.pop %v910
      %v912 = vmul.f32 %v845, 1.442695
      %v913 = vpow.pop %v912
      %v914 = vmul.f32 %v846, 1.442695
      %v915 = vpow.pop %v914
      %v916 = vmul.f32 %v847, 1.442695
      %v917 = vpow.pop %v916
      %v918 = vmul.f32 %v848, 1.442695
      %v919 = vpow.pop %v918
      %v920 = vmul.f32 %v849, 1.442695
      %v921 = vpow.pop %v920
      %v922 = vmul.f32 %v850, 1.442695
      %v923 = vpow.pop %v922
      %v924 = vmul.f32 %v851, 1.442695
      %v925 = vpow.pop %v924
      %v926 = vmul.f32 %v852, 1.442695
      %v927 = vpow.pop %v926
      %v928 = vmul.f32 %v853, 1.442695
      %v929 = vpow.pop %v928
      %v930 = vmul.f32 %v854, 1.442695
      %v931 = vpow.pop %v930
      %v932 = vmul.f32 %v855, 1.442695
      %v933 = vpow.pop %v932
      %v934 = vmul.f32 %v856, 1.442695
      %v935 = vpow.pop %v934
      %v936 = vmul.f32 %v857, 1.442695
      %v937 = vpow.pop %v936
      %v938 = vmul.f32 %v858, 1.442695
      %v939 = vpow.pop %v938
      %v940 = vmul.f32 %v859, 1.442695
      %v941 = vpow.pop %v940
      %v942 = vmul.f32 %v860, 1.442695
      %v943 = vpow.pop %v942
      %v944 = vmul.f32 %v861, 1.442695
      %v945 = vpow.pop %v944
      %v946 = vmul.f32 %v862, 1.442695
      %v947 = vpow.pop %v946
      %v948 = vmul.f32 %v863, 1.442695
      %v949 = vpow.pop %v948
      %v950 = vmul.f32 %v864, 1.442695
      %v951 = vpow.pop %v950
      %v952 = vmul.f32 %v865, 1.442695
      %v953 = vpow.pop %v952
      %v954 = vmul.f32 %v866, 1.442695
      %v955 = vpow.pop %v954
      %v956 = vmul.f32 %v867, 1.442695
      %v957 = vpow.pop %v956
      %v958 = vmul.f32 %v868, 1.442695
      %v959 = vpow.pop %v958
      %v960 = vmul.f32 %v869, 1.442695
      %v961 = vpow.pop %v960
      %v962 = vmul.f32 %v870, 1.442695
      %v963 = vpow.pop %v962
      %v964 = vmul.f32 %v871, 1.442695
      %v965 = vpow.pop %v964
      %v966 = vmul.f32 %v872, 1.442695
      %v967 = vpow.pop %v966
      %v968 = vmul.f32 %v873, 1.442695
      %v969 = vpow.pop %v968
      %v970 = vmul.f32 %v874, 1.442695
      %v971 = vpow.pop %v970
      %v972 = vmul.f32 %v875, 1.442695
      %v973 = vpow.pop %v972
      %v974 = vmul.f32 %v876, 1.442695
      %v975 = vpow.pop %v974
      %v976 = vmul.f32 %v877, 1.442695
      %v977 = vpow.pop %v976
      %v978 = vmul.f32 %v878, 1.442695
      %v979 = vpow.pop %v978
      %v980 = vmul.f32 %v879, 1.442695
      %v981 = vpow.pop %v980
      %v982 = vmul.f32 %v880, 1.442695
      %v983 = vpow.pop %v982
      %v984 = vmul.f32 %v881, 1.442695
      %v985 = vpow.pop %v984
      %v986 = vmul.f32 %v882, 1.442695
      %v987 = vpow.pop %v986
      %v988 = vmul.f32 %v883, 1.442695
      %v989 = vpow.pop %v988
      %v990 = vmul.f32 %v884, 1.442695
      %v991 = vpow.pop %v990
      %v992 = vmul.f32 %v885, 1.442695
      %v993 = vpow.pop %v992
      %v994 = vmul.f32 %v886, 1.442695
      %v995 = vpow.pop %v994
      %v996 = vmul.f32 %v887, 1.442695
      %v997 = vpow.pop %v996
      %v998 = vmul.f32 %v888, 1.442695
      %v999 = vpow.pop %v998
      %v1000 = vmul.f32 %v889, 1.442695
      %v1001 = vpow.pop %v1000
      %v1002 = vmul.f32 %v890, 1.442695
      %v1003 = vpow.pop %v1002
      %v1004 = vmul.f32 %v891, 1.442695
      %v1005 = vpow.pop %v1004
      %v1006 = vmul.f32 %v892, 1.442695
      %v1007 = vpow.pop %v1006
      %v1008 = vmul.f32 %v893, 1.442695
      %v1009 = vpow.pop %v1008
      %v1010 = vmul.f32 %v894, 1.442695
      %v1011 = vpow.pop %v1010
      %v1012 = vmul.f32 %v895, 1.442695
      %v1013 = vpow.pop %v1012
      %v1014 = vmul.f32 %v896, 1.442695
      %v1015 = vpow.pop %v1014
      %v1016 = vmul.f32 %v897, 1.442695
      %v1017 = vpow.pop %v1016
      %v1018 = vmul.f32 %v898, 1.442695
      %v1019 = vpow.pop %v1018
      %v1020 = vmul.f32 %v899, 1.442695
      %v1021 = vpow.pop %v1020
      %v1022 = vmul.f32 %v900, 1.442695
      %v1023 = vpow.pop %v1022
      %v1024 = vmul.f32 %v901, 1.442695
      %v1025 = vpow.pop %v1024
      %v1026 = vmul.f32 %v902, 1.442695
      %v1027 = vpow.pop %v1026
      %v1028 = vmul.f32 %v903, 1.442695
      %v1029 = vpow.pop %v1028
      %v1030 = vmul.f32 %v904, 1.442695
      %v1031 = vpow.pop %v1030
      %v1032 = vmul.f32 %v905, 1.442695
      %v1033 = vpow.pop %v1032
      %v1034 = vadd.f32 %v907, %v909
      %1035 = vadd.xlane.f32.xlu0 %v1034
      %v1036 = vpop.xlane.xlu0 %1035
      %v1037 = vadd.f32 %v911, %v913
      %1038 = vadd.xlane.f32.xlu0 %v1037
      %v1039 = vpop.xlane.xlu0 %1038
      %v1040 = vadd.f32 %v915, %v917
      %1041 = vadd.xlane.f32.xlu0 %v1040
      %v1042 = vpop.xlane.xlu0 %1041
      %v1043 = vadd.f32 %v919, %v921
      %1044 = vadd.xlane.f32.xlu0 %v1043
      %v1045 = vpop.xlane.xlu0 %1044
      %v1046 = vadd.f32 %v923, %v925
      %1047 = vadd.xlane.f32.xlu0 %v1046
      %v1048 = vpop.xlane.xlu0 %1047
      %v1049 = vadd.f32 %v927, %v929
      %1050 = vadd.xlane.f32.xlu0 %v1049
      %v1051 = vpop.xlane.xlu0 %1050
      %v1052 = vadd.f32 %v931, %v933
      %1053 = vadd.xlane.f32.xlu0 %v1052
      %v1054 = vpop.xlane.xlu0 %1053
      %v1055 = vadd.f32 %v935, %v937
      %1056 = vadd.xlane.f32.xlu0 %v1055
      %v1057 = vpop.xlane.xlu0 %1056
      %v1058 = vadd.f32 %v939, %v941
      %1059 = vadd.xlane.f32.xlu0 %v1058
      %v1060 = vpop.xlane.xlu0 %1059
      %v1061 = vadd.f32 %v943, %v945
      %1062 = vadd.xlane.f32.xlu0 %v1061
      %v1063 = vpop.xlane.xlu0 %1062
      %v1064 = vadd.f32 %v947, %v949
      %1065 = vadd.xlane.f32.xlu0 %v1064
      %v1066 = vpop.xlane.xlu0 %1065
      %v1067 = vadd.f32 %v951, %v953
      %1068 = vadd.xlane.f32.xlu0 %v1067
      %v1069 = vpop.xlane.xlu0 %1068
      %v1070 = vadd.f32 %v955, %v957
      %1071 = vadd.xlane.f32.xlu0 %v1070
      %v1072 = vpop.xlane.xlu0 %1071
      %v1073 = vadd.f32 %v959, %v961
      %1074 = vadd.xlane.f32.xlu0 %v1073
      %v1075 = vpop.xlane.xlu0 %1074
      %v1076 = vadd.f32 %v963, %v965
      %1077 = vadd.xlane.f32.xlu0 %v1076
      %v1078 = vpop.xlane.xlu0 %1077
      %v1079 = vadd.f32 %v967, %v969
      %1080 = vadd.xlane.f32.xlu0 %v1079
      %v1081 = vpop.xlane.xlu0 %1080
      %v1082 = vadd.f32 %v971, %v973
      %1083 = vadd.xlane.f32.xlu0 %v1082
      %v1084 = vpop.xlane.xlu0 %1083
      %v1085 = vadd.f32 %v975, %v977
      %1086 = vadd.xlane.f32.xlu0 %v1085
      %v1087 = vpop.xlane.xlu0 %1086
      %v1088 = vadd.f32 %v979, %v981
      %1089 = vadd.xlane.f32.xlu0 %v1088
      %v1090 = vpop.xlane.xlu0 %1089
      %v1091 = vadd.f32 %v983, %v985
      %1092 = vadd.xlane.f32.xlu0 %v1091
      %v1093 = vpop.xlane.xlu0 %1092
      %v1094 = vadd.f32 %v987, %v989
      %1095 = vadd.xlane.f32.xlu0 %v1094
      %v1096 = vpop.xlane.xlu0 %1095
      %v1097 = vadd.f32 %v991, %v993
      %1098 = vadd.xlane.f32.xlu0 %v1097
      %v1099 = vpop.xlane.xlu0 %1098
      %v1100 = vadd.f32 %v995, %v997
      %1101 = vadd.xlane.f32.xlu0 %v1100
      %v1102 = vpop.xlane.xlu0 %1101
      %v1103 = vadd.f32 %v999, %v1001
      %1104 = vadd.xlane.f32.xlu0 %v1103
      %v1105 = vpop.xlane.xlu0 %1104
      %v1106 = vadd.f32 %v1003, %v1005
      %1107 = vadd.xlane.f32.xlu0 %v1106
      %v1108 = vpop.xlane.xlu0 %1107
      %v1109 = vadd.f32 %v1007, %v1009
      %1110 = vadd.xlane.f32.xlu0 %v1109
      %v1111 = vpop.xlane.xlu0 %1110
      %v1112 = vadd.f32 %v1011, %v1013
      %1113 = vadd.xlane.f32.xlu0 %v1112
      %v1114 = vpop.xlane.xlu0 %1113
      %v1115 = vadd.f32 %v1015, %v1017
      %1116 = vadd.xlane.f32.xlu0 %v1115
      %v1117 = vpop.xlane.xlu0 %1116
      %v1118 = vadd.f32 %v1019, %v1021
      %1119 = vadd.xlane.f32.xlu0 %v1118
      %v1120 = vpop.xlane.xlu0 %1119
      %v1121 = vadd.f32 %v1023, %v1025
      %1122 = vadd.xlane.f32.xlu0 %v1121
      %v1123 = vpop.xlane.xlu0 %1122
      %v1124 = vadd.f32 %v1027, %v1029
      %1125 = vadd.xlane.f32.xlu0 %v1124
      %v1126 = vpop.xlane.xlu0 %1125
      %v1127 = vadd.f32 %v1031, %v1033
      %1128 = vadd.xlane.f32.xlu0 %v1127
      %v1129 = vpop.xlane.xlu0 %1128
      %v1130 = vld [vmem:[#allocation3] sm:$0x3]
      %v1131 = vadd.f32 %v907, %v911
      %v1132 = vadd.f32 %v1131, %v915
      %v1133 = vadd.f32 %v1132, %v919
      %v1134 = vadd.f32 %v1133, %v923
      %v1135 = vadd.f32 %v1134, %v927
      %v1136 = vadd.f32 %v1135, %v931
      %v1137 = vadd.f32 %v1136, %v935
      %v1138 = vadd.f32 %v1137, %v939
      %v1139 = vadd.f32 %v1138, %v943
      %v1140 = vadd.f32 %v1139, %v947
      %v1141 = vadd.f32 %v1140, %v951
      %v1142 = vadd.f32 %v1141, %v955
      %v1143 = vadd.f32 %v1142, %v959
      %v1144 = vadd.f32 %v1143, %v963
      %v1145 = vadd.f32 %v1144, %v967
      %v1146 = vadd.f32 %v1145, %v971
      %v1147 = vadd.f32 %v1146, %v975
      %v1148 = vadd.f32 %v1147, %v979
      %v1149 = vadd.f32 %v1148, %v983
      %v1150 = vadd.f32 %v1149, %v987
      %v1151 = vadd.f32 %v1150, %v991
      %v1152 = vadd.f32 %v1151, %v995
      %v1153 = vadd.f32 %v1152, %v999
      %v1154 = vadd.f32 %v1153, %v1003
      %v1155 = vadd.f32 %v1154, %v1007
      %v1156 = vadd.f32 %v1155, %v1011
      %v1157 = vadd.f32 %v1156, %v1015
      %v1158 = vadd.f32 %v1157, %v1019
      %v1159 = vadd.f32 %v1158, %v1023
      %v1160 = vadd.f32 %v1159, %v1027
      %v1161 = vadd.f32 %v1160, %v1031
      %v1162 = vrot.slane %v1161, 4
      %v1163 = vadd.f32 %v1161, %v1162
      %v1164 = vrot.slane %v1163, 2
      %v1165 = vadd.f32 %v1163, %v1164
      %v1166 = vrot.slane %v1165, 1
      %v1167 = vadd.f32 %v1165, %v1166
      %v1168 = vadd.f32 %v909, %v913
      %v1169 = vadd.f32 %v1168, %v917
      %v1170 = vadd.f32 %v1169, %v921
      %v1171 = vadd.f32 %v1170, %v925
      %v1172 = vadd.f32 %v1171, %v929
      %v1173 = vadd.f32 %v1172, %v933
      %v1174 = vadd.f32 %v1173, %v937
      %v1175 = vadd.f32 %v1174, %v941
      %v1176 = vadd.f32 %v1175, %v945
      %v1177 = vadd.f32 %v1176, %v949
      %v1178 = vadd.f32 %v1177, %v953
      %v1179 = vadd.f32 %v1178, %v957
      %v1180 = vadd.f32 %v1179, %v961
      %v1181 = vadd.f32 %v1180, %v965
      %v1182 = vadd.f32 %v1181, %v969
      %v1183 = vadd.f32 %v1182, %v973
      %v1184 = vadd.f32 %v1183, %v977
      %v1185 = vadd.f32 %v1184, %v981
      %v1186 = vadd.f32 %v1185, %v985
      %v1187 = vadd.f32 %v1186, %v989
      %v1188 = vadd.f32 %v1187, %v993
      %v1189 = vadd.f32 %v1188, %v997
      %v1190 = vadd.f32 %v1189, %v1001
      %v1191 = vadd.f32 %v1190, %v1005
      %v1192 = vadd.f32 %v1191, %v1009
      %v1193 = vadd.f32 %v1192, %v1013
      %v1194 = vadd.f32 %v1193, %v1017
      %v1195 = vadd.f32 %v1194, %v1021
      %v1196 = vadd.f32 %v1195, %v1025
      %v1197 = vadd.f32 %v1196, %v1029
      %v1198 = vadd.f32 %v1197, %v1033
      %v1199 = vrot.slane %v1198, 4
      %v1200 = vadd.f32 %v1198, %v1199
      %v1201 = vrot.slane %v1200, 2
      %v1202 = vadd.f32 %v1200, %v1201
      %v1203 = vrot.slane %v1202, 1
      %v1204 = vadd.f32 %v1202, %v1203
      %v1207 = vrot.slane %v1204, 7
      %vm1208 = vcmask 1040384
      %v1209 = vsel %vm1208, %v1167, %v1207
      %v1211 = vadd.f32 %v1130, %v1209
      %1212 = vst.msk [vmem:[#allocation3] sm:$0x3] %vm259, %v1211
      %v1213 = vrsqrt.pop %v1036
      %v1214 = vmul.f32 %v1213, %v1036
      %v1215 = vmul.f32 %v1214, %v1213
      %v1216 = vmul.f32 0.5, %v1215
      %v1217 = vsub.f32 1.5, %v1216
      %v1218 = vmul.f32 %v1213, %v1217
      %vm1219 = vweird.f32 %v1036
      %vm1220 = vweird.f32 %v1213
      %vm1221 = vmor %vm1219, %vm1220
      %v1222 = vsel %vm1221, %v1213, %v1218
      %v1223 = vrsqrt.pop %v1039
      %v1224 = vmul.f32 %v1223, %v1039
      %v1225 = vmul.f32 %v1224, %v1223
      %v1226 = vmul.f32 0.5, %v1225
      %v1227 = vsub.f32 1.5, %v1226
      %v1228 = vmul.f32 %v1223, %v1227
      %vm1229 = vweird.f32 %v1039
      %vm1230 = vweird.f32 %v1223
      %vm1231 = vmor %vm1229, %vm1230
      %v1232 = vsel %vm1231, %v1223, %v1228
      %v1233 = vrsqrt.pop %v1042
      %v1234 = vmul.f32 %v1233, %v1042
      %v1235 = vmul.f32 %v1234, %v1233
      %v1236 = vmul.f32 0.5, %v1235
      %v1237 = vsub.f32 1.5, %v1236
      %v1238 = vmul.f32 %v1233, %v1237
      %vm1239 = vweird.f32 %v1042
      %vm1240 = vweird.f32 %v1233
      %vm1241 = vmor %vm1239, %vm1240
      %v1242 = vsel %vm1241, %v1233, %v1238
      %v1243 = vrsqrt.pop %v1045
      %v1244 = vmul.f32 %v1243, %v1045
      %v1245 = vmul.f32 %v1244, %v1243
      %v1246 = vmul.f32 0.5, %v1245
      %v1247 = vsub.f32 1.5, %v1246
      %v1248 = vmul.f32 %v1243, %v1247
      %vm1249 = vweird.f32 %v1045
      %vm1250 = vweird.f32 %v1243
      %vm1251 = vmor %vm1249, %vm1250
      %v1252 = vsel %vm1251, %v1243, %v1248
      %v1253 = vrsqrt.pop %v1048
      %v1254 = vmul.f32 %v1253, %v1048
      %v1255 = vmul.f32 %v1254, %v1253
      %v1256 = vmul.f32 0.5, %v1255
      %v1257 = vsub.f32 1.5, %v1256
      %v1258 = vmul.f32 %v1253, %v1257
      %vm1259 = vweird.f32 %v1048
      %vm1260 = vweird.f32 %v1253
      %vm1261 = vmor %vm1259, %vm1260
      %v1262 = vsel %vm1261, %v1253, %v1258
      %v1263 = vrsqrt.pop %v1051
      %v1264 = vmul.f32 %v1263, %v1051
      %v1265 = vmul.f32 %v1264, %v1263
      %v1266 = vmul.f32 0.5, %v1265
      %v1267 = vsub.f32 1.5, %v1266
      %v1268 = vmul.f32 %v1263, %v1267
      %vm1269 = vweird.f32 %v1051
      %vm1270 = vweird.f32 %v1263
      %vm1271 = vmor %vm1269, %vm1270
      %v1272 = vsel %vm1271, %v1263, %v1268
      %v1273 = vrsqrt.pop %v1054
      %v1274 = vmul.f32 %v1273, %v1054
      %v1275 = vmul.f32 %v1274, %v1273
      %v1276 = vmul.f32 0.5, %v1275
      %v1277 = vsub.f32 1.5, %v1276
      %v1278 = vmul.f32 %v1273, %v1277
      %vm1279 = vweird.f32 %v1054
      %vm1280 = vweird.f32 %v1273
      %vm1281 = vmor %vm1279, %vm1280
      %v1282 = vsel %vm1281, %v1273, %v1278
      %v1283 = vrsqrt.pop %v1057
      %v1284 = vmul.f32 %v1283, %v1057
      %v1285 = vmul.f32 %v1284, %v1283
      %v1286 = vmul.f32 0.5, %v1285
      %v1287 = vsub.f32 1.5, %v1286
      %v1288 = vmul.f32 %v1283, %v1287
      %vm1289 = vweird.f32 %v1057
      %vm1290 = vweird.f32 %v1283
      %vm1291 = vmor %vm1289, %vm1290
      %v1292 = vsel %vm1291, %v1283, %v1288
      %v1293 = vrsqrt.pop %v1060
      %v1294 = vmul.f32 %v1293, %v1060
      %v1295 = vmul.f32 %v1294, %v1293
      %v1296 = vmul.f32 0.5, %v1295
      %v1297 = vsub.f32 1.5, %v1296
      %v1298 = vmul.f32 %v1293, %v1297
      %vm1299 = vweird.f32 %v1060
      %vm1300 = vweird.f32 %v1293
      %vm1301 = vmor %vm1299, %vm1300
      %v1302 = vsel %vm1301, %v1293, %v1298
      %v1303 = vrsqrt.pop %v1063
      %v1304 = vmul.f32 %v1303, %v1063
      %v1305 = vmul.f32 %v1304, %v1303
      %v1306 = vmul.f32 0.5, %v1305
      %v1307 = vsub.f32 1.5, %v1306
      %v1308 = vmul.f32 %v1303, %v1307
      %vm1309 = vweird.f32 %v1063
      %vm1310 = vweird.f32 %v1303
      %vm1311 = vmor %vm1309, %vm1310
      %v1312 = vsel %vm1311, %v1303, %v1308
      %v1313 = vrsqrt.pop %v1066
      %v1314 = vmul.f32 %v1313, %v1066
      %v1315 = vmul.f32 %v1314, %v1313
      %v1316 = vmul.f32 0.5, %v1315
      %v1317 = vsub.f32 1.5, %v1316
      %v1318 = vmul.f32 %v1313, %v1317
      %vm1319 = vweird.f32 %v1066
      %vm1320 = vweird.f32 %v1313
      %vm1321 = vmor %vm1319, %vm1320
      %v1322 = vsel %vm1321, %v1313, %v1318
      %v1323 = vrsqrt.pop %v1069
      %v1324 = vmul.f32 %v1323, %v1069
      %v1325 = vmul.f32 %v1324, %v1323
      %v1326 = vmul.f32 0.5, %v1325
      %v1327 = vsub.f32 1.5, %v1326
      %v1328 = vmul.f32 %v1323, %v1327
      %vm1329 = vweird.f32 %v1069
      %vm1330 = vweird.f32 %v1323
      %vm1331 = vmor %vm1329, %vm1330
      %v1332 = vsel %vm1331, %v1323, %v1328
      %v1333 = vrsqrt.pop %v1072
      %v1334 = vmul.f32 %v1333, %v1072
      %v1335 = vmul.f32 %v1334, %v1333
      %v1336 = vmul.f32 0.5, %v1335
      %v1337 = vsub.f32 1.5, %v1336
      %v1338 = vmul.f32 %v1333, %v1337
      %vm1339 = vweird.f32 %v1072
      %vm1340 = vweird.f32 %v1333
      %vm1341 = vmor %vm1339, %vm1340
      %v1342 = vsel %vm1341, %v1333, %v1338
      %v1343 = vrsqrt.pop %v1075
      %v1344 = vmul.f32 %v1343, %v1075
      %v1345 = vmul.f32 %v1344, %v1343
      %v1346 = vmul.f32 0.5, %v1345
      %v1347 = vsub.f32 1.5, %v1346
      %v1348 = vmul.f32 %v1343, %v1347
      %vm1349 = vweird.f32 %v1075
      %vm1350 = vweird.f32 %v1343
      %vm1351 = vmor %vm1349, %vm1350
      %v1352 = vsel %vm1351, %v1343, %v1348
      %v1353 = vrsqrt.pop %v1078
      %v1354 = vmul.f32 %v1353, %v1078
      %v1355 = vmul.f32 %v1354, %v1353
      %v1356 = vmul.f32 0.5, %v1355
      %v1357 = vsub.f32 1.5, %v1356
      %v1358 = vmul.f32 %v1353, %v1357
      %vm1359 = vweird.f32 %v1078
      %vm1360 = vweird.f32 %v1353
      %vm1361 = vmor %vm1359, %vm1360
      %v1362 = vsel %vm1361, %v1353, %v1358
      %v1363 = vrsqrt.pop %v1081
      %v1364 = vmul.f32 %v1363, %v1081
      %v1365 = vmul.f32 %v1364, %v1363
      %v1366 = vmul.f32 0.5, %v1365
      %v1367 = vsub.f32 1.5, %v1366
      %v1368 = vmul.f32 %v1363, %v1367
      %vm1369 = vweird.f32 %v1081
      %vm1370 = vweird.f32 %v1363
      %vm1371 = vmor %vm1369, %vm1370
      %v1372 = vsel %vm1371, %v1363, %v1368
      %v1373 = vrsqrt.pop %v1084
      %v1374 = vmul.f32 %v1373, %v1084
      %v1375 = vmul.f32 %v1374, %v1373
      %v1376 = vmul.f32 0.5, %v1375
      %v1377 = vsub.f32 1.5, %v1376
      %v1378 = vmul.f32 %v1373, %v1377
      %vm1379 = vweird.f32 %v1084
      %vm1380 = vweird.f32 %v1373
      %vm1381 = vmor %vm1379, %vm1380
      %v1382 = vsel %vm1381, %v1373, %v1378
      %v1383 = vrsqrt.pop %v1087
      %v1384 = vmul.f32 %v1383, %v1087
      %v1385 = vmul.f32 %v1384, %v1383
      %v1386 = vmul.f32 0.5, %v1385
      %v1387 = vsub.f32 1.5, %v1386
      %v1388 = vmul.f32 %v1383, %v1387
      %vm1389 = vweird.f32 %v1087
      %vm1390 = vweird.f32 %v1383
      %vm1391 = vmor %vm1389, %vm1390
      %v1392 = vsel %vm1391, %v1383, %v1388
      %v1393 = vrsqrt.pop %v1090
      %v1394 = vmul.f32 %v1393, %v1090
      %v1395 = vmul.f32 %v1394, %v1393
      %v1396 = vmul.f32 0.5, %v1395
      %v1397 = vsub.f32 1.5, %v1396
      %v1398 = vmul.f32 %v1393, %v1397
      %vm1399 = vweird.f32 %v1090
      %vm1400 = vweird.f32 %v1393
      %vm1401 = vmor %vm1399, %vm1400
      %v1402 = vsel %vm1401, %v1393, %v1398
      %v1403 = vrsqrt.pop %v1093
      %v1404 = vmul.f32 %v1403, %v1093
      %v1405 = vmul.f32 %v1404, %v1403
      %v1406 = vmul.f32 0.5, %v1405
      %v1407 = vsub.f32 1.5, %v1406
      %v1408 = vmul.f32 %v1403, %v1407
      %vm1409 = vweird.f32 %v1093
      %vm1410 = vweird.f32 %v1403
      %vm1411 = vmor %vm1409, %vm1410
      %v1412 = vsel %vm1411, %v1403, %v1408
      %v1413 = vrsqrt.pop %v1096
      %v1414 = vmul.f32 %v1413, %v1096
      %v1415 = vmul.f32 %v1414, %v1413
      %v1416 = vmul.f32 0.5, %v1415
      %v1417 = vsub.f32 1.5, %v1416
      %v1418 = vmul.f32 %v1413, %v1417
      %vm1419 = vweird.f32 %v1096
      %vm1420 = vweird.f32 %v1413
      %vm1421 = vmor %vm1419, %vm1420
      %v1422 = vsel %vm1421, %v1413, %v1418
      %v1423 = vrsqrt.pop %v1099
      %v1424 = vmul.f32 %v1423, %v1099
      %v1425 = vmul.f32 %v1424, %v1423
      %v1426 = vmul.f32 0.5, %v1425
      %v1427 = vsub.f32 1.5, %v1426
      %v1428 = vmul.f32 %v1423, %v1427
      %vm1429 = vweird.f32 %v1099
      %vm1430 = vweird.f32 %v1423
      %vm1431 = vmor %vm1429, %vm1430
      %v1432 = vsel %vm1431, %v1423, %v1428
      %v1433 = vrsqrt.pop %v1102
      %v1434 = vmul.f32 %v1433, %v1102
      %v1435 = vmul.f32 %v1434, %v1433
      %v1436 = vmul.f32 0.5, %v1435
      %v1437 = vsub.f32 1.5, %v1436
      %v1438 = vmul.f32 %v1433, %v1437
      %vm1439 = vweird.f32 %v1102
      %vm1440 = vweird.f32 %v1433
      %vm1441 = vmor %vm1439, %vm1440
      %v1442 = vsel %vm1441, %v1433, %v1438
      %v1443 = vrsqrt.pop %v1105
      %v1444 = vmul.f32 %v1443, %v1105
      %v1445 = vmul.f32 %v1444, %v1443
      %v1446 = vmul.f32 0.5, %v1445
      %v1447 = vsub.f32 1.5, %v1446
      %v1448 = vmul.f32 %v1443, %v1447
      %vm1449 = vweird.f32 %v1105
      %vm1450 = vweird.f32 %v1443
      %vm1451 = vmor %vm1449, %vm1450
      %v1452 = vsel %vm1451, %v1443, %v1448
      %v1453 = vrsqrt.pop %v1108
      %v1454 = vmul.f32 %v1453, %v1108
      %v1455 = vmul.f32 %v1454, %v1453
      %v1456 = vmul.f32 0.5, %v1455
      %v1457 = vsub.f32 1.5, %v1456
      %v1458 = vmul.f32 %v1453, %v1457
      %vm1459 = vweird.f32 %v1108
      %vm1460 = vweird.f32 %v1453
      %vm1461 = vmor %vm1459, %vm1460
      %v1462 = vsel %vm1461, %v1453, %v1458
      %v1463 = vrsqrt.pop %v1111
      %v1464 = vmul.f32 %v1463, %v1111
      %v1465 = vmul.f32 %v1464, %v1463
      %v1466 = vmul.f32 0.5, %v1465
      %v1467 = vsub.f32 1.5, %v1466
      %v1468 = vmul.f32 %v1463, %v1467
      %vm1469 = vweird.f32 %v1111
      %vm1470 = vweird.f32 %v1463
      %vm1471 = vmor %vm1469, %vm1470
      %v1472 = vsel %vm1471, %v1463, %v1468
      %v1473 = vrsqrt.pop %v1114
      %v1474 = vmul.f32 %v1473, %v1114
      %v1475 = vmul.f32 %v1474, %v1473
      %v1476 = vmul.f32 0.5, %v1475
      %v1477 = vsub.f32 1.5, %v1476
      %v1478 = vmul.f32 %v1473, %v1477
      %vm1479 = vweird.f32 %v1114
      %vm1480 = vweird.f32 %v1473
      %vm1481 = vmor %vm1479, %vm1480
      %v1482 = vsel %vm1481, %v1473, %v1478
      %v1483 = vrsqrt.pop %v1117
      %v1484 = vmul.f32 %v1483, %v1117
      %v1485 = vmul.f32 %v1484, %v1483
      %v1486 = vmul.f32 0.5, %v1485
      %v1487 = vsub.f32 1.5, %v1486
      %v1488 = vmul.f32 %v1483, %v1487
      %vm1489 = vweird.f32 %v1117
      %vm1490 = vweird.f32 %v1483
      %vm1491 = vmor %vm1489, %vm1490
      %v1492 = vsel %vm1491, %v1483, %v1488
      %v1493 = vrsqrt.pop %v1120
      %v1494 = vmul.f32 %v1493, %v1120
      %v1495 = vmul.f32 %v1494, %v1493
      %v1496 = vmul.f32 0.5, %v1495
      %v1497 = vsub.f32 1.5, %v1496
      %v1498 = vmul.f32 %v1493, %v1497
      %vm1499 = vweird.f32 %v1120
      %vm1500 = vweird.f32 %v1493
      %vm1501 = vmor %vm1499, %vm1500
      %v1502 = vsel %vm1501, %v1493, %v1498
      %v1503 = vrsqrt.pop %v1123
      %v1504 = vmul.f32 %v1503, %v1123
      %v1505 = vmul.f32 %v1504, %v1503
      %v1506 = vmul.f32 0.5, %v1505
      %v1507 = vsub.f32 1.5, %v1506
      %v1508 = vmul.f32 %v1503, %v1507
      %vm1509 = vweird.f32 %v1123
      %vm1510 = vweird.f32 %v1503
      %vm1511 = vmor %vm1509, %vm1510
      %v1512 = vsel %vm1511, %v1503, %v1508
      %v1513 = vrsqrt.pop %v1126
      %v1514 = vmul.f32 %v1513, %v1126
      %v1515 = vmul.f32 %v1514, %v1513
      %v1516 = vmul.f32 0.5, %v1515
      %v1517 = vsub.f32 1.5, %v1516
      %v1518 = vmul.f32 %v1513, %v1517
      %vm1519 = vweird.f32 %v1126
      %vm1520 = vweird.f32 %v1513
      %vm1521 = vmor %vm1519, %vm1520
      %v1522 = vsel %vm1521, %v1513, %v1518
      %v1523 = vrsqrt.pop %v1129
      %v1524 = vmul.f32 %v1523, %v1129
      %v1525 = vmul.f32 %v1524, %v1523
      %v1526 = vmul.f32 0.5, %v1525
      %v1527 = vsub.f32 1.5, %v1526
      %v1528 = vmul.f32 %v1523, %v1527
      %vm1529 = vweird.f32 %v1129
      %vm1530 = vweird.f32 %v1523
      %vm1531 = vmor %vm1529, %vm1530
      %v1532 = vsel %vm1531, %v1523, %v1528
      %v1533 = vmul.f32 %v1222, %v907
      %v1534 = vmul.f32 %v1222, %v909
      %v1535 = vmul.f32 %v1232, %v911
      %v1536 = vmul.f32 %v1232, %v913
      %v1537 = vmul.f32 %v1242, %v915
      %v1538 = vmul.f32 %v1242, %v917
      %v1539 = vmul.f32 %v1252, %v919
      %v1540 = vmul.f32 %v1252, %v921
      %v1541 = vmul.f32 %v1262, %v923
      %v1542 = vmul.f32 %v1262, %v925
      %v1543 = vmul.f32 %v1272, %v927
      %v1544 = vmul.f32 %v1272, %v929
      %v1545 = vmul.f32 %v1282, %v931
      %v1546 = vmul.f32 %v1282, %v933
      %v1547 = vmul.f32 %v1292, %v935
      %v1548 = vmul.f32 %v1292, %v937
      %v1549 = vmul.f32 %v1302, %v939
      %v1550 = vmul.f32 %v1302, %v941
      %v1551 = vmul.f32 %v1312, %v943
      %v1552 = vmul.f32 %v1312, %v945
      %v1553 = vmul.f32 %v1322, %v947
      %v1554 = vmul.f32 %v1322, %v949
      %v1555 = vmul.f32 %v1332, %v951
      %v1556 = vmul.f32 %v1332, %v953
      %v1557 = vmul.f32 %v1342, %v955
      %v1558 = vmul.f32 %v1342, %v957
      %v1559 = vmul.f32 %v1352, %v959
      %v1560 = vmul.f32 %v1352, %v961
      %v1561 = vmul.f32 %v1362, %v963
      %v1562 = vmul.f32 %v1362, %v965
      %v1563 = vmul.f32 %v1372, %v967
      %v1564 = vmul.f32 %v1372, %v969
      %v1565 = vmul.f32 %v1382, %v971
      %v1566 = vmul.f32 %v1382, %v973
      %v1567 = vmul.f32 %v1392, %v975
      %v1568 = vmul.f32 %v1392, %v977
      %v1569 = vmul.f32 %v1402, %v979
      %v1570 = vmul.f32 %v1402, %v981
      %v1571 = vmul.f32 %v1412, %v983
      %v1572 = vmul.f32 %v1412, %v985
      %v1573 = vmul.f32 %v1422, %v987
      %v1574 = vmul.f32 %v1422, %v989
      %v1575 = vmul.f32 %v1432, %v991
      %v1576 = vmul.f32 %v1432, %v993
      %v1577 = vmul.f32 %v1442, %v995
      %v1578 = vmul.f32 %v1442, %v997
      %v1579 = vmul.f32 %v1452, %v999
      %v1580 = vmul.f32 %v1452, %v1001
      %v1581 = vmul.f32 %v1462, %v1003
      %v1582 = vmul.f32 %v1462, %v1005
      %v1583 = vmul.f32 %v1472, %v1007
      %v1584 = vmul.f32 %v1472, %v1009
      %v1585 = vmul.f32 %v1482, %v1011
      %v1586 = vmul.f32 %v1482, %v1013
      %v1587 = vmul.f32 %v1492, %v1015
      %v1588 = vmul.f32 %v1492, %v1017
      %v1589 = vmul.f32 %v1502, %v1019
      %v1590 = vmul.f32 %v1502, %v1021
      %v1591 = vmul.f32 %v1512, %v1023
      %v1592 = vmul.f32 %v1512, %v1025
      %v1593 = vmul.f32 %v1522, %v1027
      %v1594 = vmul.f32 %v1522, %v1029
      %v1595 = vmul.f32 %v1532, %v1031
      %v1596 = vmul.f32 %v1532, %v1033
      %v1597 = vpack.c.bf16 %v1534, %v1533
      %v1598 = vpack.c.bf16 %v1536, %v1535
      %v1599 = vpack.c.bf16 %v1538, %v1537
      %v1600 = vpack.c.bf16 %v1540, %v1539
      %v1601 = vpack.c.bf16 %v1542, %v1541
      %v1602 = vpack.c.bf16 %v1544, %v1543
      %v1603 = vpack.c.bf16 %v1546, %v1545
      %v1604 = vpack.c.bf16 %v1548, %v1547
      %v1605 = vpack.c.bf16 %v1550, %v1549
      %v1606 = vpack.c.bf16 %v1552, %v1551
      %v1607 = vpack.c.bf16 %v1554, %v1553
      %v1608 = vpack.c.bf16 %v1556, %v1555
      %v1609 = vpack.c.bf16 %v1558, %v1557
      %v1610 = vpack.c.bf16 %v1560, %v1559
      %v1611 = vpack.c.bf16 %v1562, %v1561
      %v1612 = vpack.c.bf16 %v1564, %v1563
      %v1613 = vpack.c.bf16 %v1566, %v1565
      %v1614 = vpack.c.bf16 %v1568, %v1567
      %v1615 = vpack.c.bf16 %v1570, %v1569
      %v1616 = vpack.c.bf16 %v1572, %v1571
      %v1617 = vpack.c.bf16 %v1574, %v1573
      %v1618 = vpack.c.bf16 %v1576, %v1575
      %v1619 = vpack.c.bf16 %v1578, %v1577
      %v1620 = vpack.c.bf16 %v1580, %v1579
      %v1621 = vpack.c.bf16 %v1582, %v1581
      %v1622 = vpack.c.bf16 %v1584, %v1583
      %v1623 = vpack.c.bf16 %v1586, %v1585
      %v1624 = vpack.c.bf16 %v1588, %v1587
      %v1625 = vpack.c.bf16 %v1590, %v1589
      %v1626 = vpack.c.bf16 %v1592, %v1591
      %v1627 = vpack.c.bf16 %v1594, %v1593
      %v1628 = vpack.c.bf16 %v1596, %v1595
      %s1629 = smul.u32 0, 2
      %s1630 = smul.addr %s1629, 4
      %s1631 = scalar_lea.vmem [#allocation2], %s1630
      %1632 = vst [vmem:[%s1631] sm:$0xff] %v1597
      %1633 = vst [vmem:[%s1631 + $0x8] sm:$0xff] %v1598
      %1634 = vst [vmem:[%s1631 + $0x10] sm:$0xff] %v1599
      %1635 = vst [vmem:[%s1631 + $0x18] sm:$0xff] %v1600
      %1636 = vst [vmem:[%s1631 + $0x20] sm:$0xff] %v1601
      %1637 = vst [vmem:[%s1631 + $0x28] sm:$0xff] %v1602
      %1638 = vst [vmem:[%s1631 + $0x30] sm:$0xff] %v1603
      %1639 = vst [vmem:[%s1631 + $0x38] sm:$0xff] %v1604
      %1640 = vst [vmem:[%s1631 + $0x40] sm:$0xff] %v1605
      %1641 = vst [vmem:[%s1631 + $0x48] sm:$0xff] %v1606
      %1642 = vst [vmem:[%s1631 + $0x50] sm:$0xff] %v1607
      %1643 = vst [vmem:[%s1631 + $0x58] sm:$0xff] %v1608
      %1644 = vst [vmem:[%s1631 + $0x60] sm:$0xff] %v1609
      %1645 = vst [vmem:[%s1631 + $0x68] sm:$0xff] %v1610
      %1646 = vst [vmem:[%s1631 + $0x70] sm:$0xff] %v1611
      %1647 = vst [vmem:[%s1631 + $0x78] sm:$0xff] %v1612
      %1648 = vst [vmem:[%s1631 + $0x80] sm:$0xff] %v1613
      %1649 = vst [vmem:[%s1631 + $0x88] sm:$0xff] %v1614
      %1650 = vst [vmem:[%s1631 + $0x90] sm:$0xff] %v1615
      %1651 = vst [vmem:[%s1631 + $0x98] sm:$0xff] %v1616
      %1652 = vst [vmem:[%s1631 + $0xa0] sm:$0xff] %v1617
      %1653 = vst [vmem:[%s1631 + $0xa8] sm:$0xff] %v1618
      %1654 = vst [vmem:[%s1631 + $0xb0] sm:$0xff] %v1619
      %1655 = vst [vmem:[%s1631 + $0xb8] sm:$0xff] %v1620
      %1656 = vst [vmem:[%s1631 + $0xc0] sm:$0xff] %v1621
      %1657 = vst [vmem:[%s1631 + $0xc8] sm:$0xff] %v1622
      %1658 = vst [vmem:[%s1631 + $0xd0] sm:$0xff] %v1623
      %1659 = vst [vmem:[%s1631 + $0xd8] sm:$0xff] %v1624
      %1660 = vst [vmem:[%s1631 + $0xe0] sm:$0xff] %v1625
      %1661 = vst [vmem:[%s1631 + $0xe8] sm:$0xff] %v1626
      %1662 = vst [vmem:[%s1631 + $0xf0] sm:$0xff] %v1627
      %1663 = vst [vmem:[%s1631 + $0xf8] sm:$0xff] %v1628
      %v1664 = vld [vmem:[#allocation3] sm:$0x3]
      %v1665 = vadd.f32 %v1664, 1e-20
      %v1666 = vrsqrt.pop %v1665
      %v1667 = vmul.f32 %v1666, %v1665
      %v1668 = vmul.f32 %v1667, %v1666
      %v1669 = vmul.f32 0.5, %v1668
      %v1670 = vsub.f32 1.5, %v1669
      %v1671 = vmul.f32 %v1666, %v1670
      %vm1672 = vweird.f32 %v1665
      %vm1673 = vweird.f32 %v1666
      %vm1674 = vmor %vm1672, %vm1673
      %v1675 = vsel %vm1674, %v1666, %v1671
      %v1676 = vmul.f32 %v1675, 4.0
      %v1677 = vld [vmem:[%s1631] sm:$0xff]
      %v1678 = vld [vmem:[%s1631 + $0x8] sm:$0xff]
      %v1679 = vld [vmem:[%s1631 + $0x10] sm:$0xff]
      %v1680 = vld [vmem:[%s1631 + $0x18] sm:$0xff]
      %v1681 = vld [vmem:[%s1631 + $0x20] sm:$0xff]
      %v1682 = vld [vmem:[%s1631 + $0x28] sm:$0xff]
      %v1683 = vld [vmem:[%s1631 + $0x30] sm:$0xff]
      %v1684 = vld [vmem:[%s1631 + $0x38] sm:$0xff]
      %v1685 = vld [vmem:[%s1631 + $0x40] sm:$0xff]
      %v1686 = vld [vmem:[%s1631 + $0x48] sm:$0xff]
      %v1687 = vld [vmem:[%s1631 + $0x50] sm:$0xff]
      %v1688 = vld [vmem:[%s1631 + $0x58] sm:$0xff]
      %v1689 = vld [vmem:[%s1631 + $0x60] sm:$0xff]
      %v1690 = vld [vmem:[%s1631 + $0x68] sm:$0xff]
      %v1691 = vld [vmem:[%s1631 + $0x70] sm:$0xff]
      %v1692 = vld [vmem:[%s1631 + $0x78] sm:$0xff]
      %v1693 = vld [vmem:[%s1631 + $0x80] sm:$0xff]
      %v1694 = vld [vmem:[%s1631 + $0x88] sm:$0xff]
      %v1695 = vld [vmem:[%s1631 + $0x90] sm:$0xff]
      %v1696 = vld [vmem:[%s1631 + $0x98] sm:$0xff]
      %v1697 = vld [vmem:[%s1631 + $0xa0] sm:$0xff]
      %v1698 = vld [vmem:[%s1631 + $0xa8] sm:$0xff]
      %v1699 = vld [vmem:[%s1631 + $0xb0] sm:$0xff]
      %v1700 = vld [vmem:[%s1631 + $0xb8] sm:$0xff]
      %v1701 = vld [vmem:[%s1631 + $0xc0] sm:$0xff]
      %v1702 = vld [vmem:[%s1631 + $0xc8] sm:$0xff]
      %v1703 = vld [vmem:[%s1631 + $0xd0] sm:$0xff]
      %v1704 = vld [vmem:[%s1631 + $0xd8] sm:$0xff]
      %v1705 = vld [vmem:[%s1631 + $0xe0] sm:$0xff]
      %v1706 = vld [vmem:[%s1631 + $0xe8] sm:$0xff]
      %v1707 = vld [vmem:[%s1631 + $0xf0] sm:$0xff]
      %v1708 = vld [vmem:[%s1631 + $0xf8] sm:$0xff]
      %v1709 = vunpack.c.l.bf16 %v1677
      %v1710 = vunpack.c.h.bf16 %v1677
      %v1711 = vunpack.c.l.bf16 %v1678
      %v1712 = vunpack.c.h.bf16 %v1678
      %v1713 = vunpack.c.l.bf16 %v1679
      %v1714 = vunpack.c.h.bf16 %v1679
      %v1715 = vunpack.c.l.bf16 %v1680
      %v1716 = vunpack.c.h.bf16 %v1680
      %v1717 = vunpack.c.l.bf16 %v1681
      %v1718 = vunpack.c.h.bf16 %v1681
      %v1719 = vunpack.c.l.bf16 %v1682
      %v1720 = vunpack.c.h.bf16 %v1682
      %v1721 = vunpack.c.l.bf16 %v1683
      %v1722 = vunpack.c.h.bf16 %v1683
      %v1723 = vunpack.c.l.bf16 %v1684
      %v1724 = vunpack.c.h.bf16 %v1684
      %v1725 = vunpack.c.l.bf16 %v1685
      %v1726 = vunpack.c.h.bf16 %v1685
      %v1727 = vunpack.c.l.bf16 %v1686
      %v1728 = vunpack.c.h.bf16 %v1686
      %v1729 = vunpack.c.l.bf16 %v1687
      %v1730 = vunpack.c.h.bf16 %v1687
      %v1731 = vunpack.c.l.bf16 %v1688
      %v1732 = vunpack.c.h.bf16 %v1688
      %v1733 = vunpack.c.l.bf16 %v1689
      %v1734 = vunpack.c.h.bf16 %v1689
      %v1735 = vunpack.c.l.bf16 %v1690
      %v1736 = vunpack.c.h.bf16 %v1690
      %v1737 = vunpack.c.l.bf16 %v1691
      %v1738 = vunpack.c.h.bf16 %v1691
      %v1739 = vunpack.c.l.bf16 %v1692
      %v1740 = vunpack.c.h.bf16 %v1692
      %v1741 = vunpack.c.l.bf16 %v1693
      %v1742 = vunpack.c.h.bf16 %v1693
      %v1743 = vunpack.c.l.bf16 %v1694
      %v1744 = vunpack.c.h.bf16 %v1694
      %v1745 = vunpack.c.l.bf16 %v1695
      %v1746 = vunpack.c.h.bf16 %v1695
      %v1747 = vunpack.c.l.bf16 %v1696
      %v1748 = vunpack.c.h.bf16 %v1696
      %v1749 = vunpack.c.l.bf16 %v1697
      %v1750 = vunpack.c.h.bf16 %v1697
      %v1751 = vunpack.c.l.bf16 %v1698
      %v1752 = vunpack.c.h.bf16 %v1698
      %v1753 = vunpack.c.l.bf16 %v1699
      %v1754 = vunpack.c.h.bf16 %v1699
      %v1755 = vunpack.c.l.bf16 %v1700
      %v1756 = vunpack.c.h.bf16 %v1700
      %v1757 = vunpack.c.l.bf16 %v1701
      %v1758 = vunpack.c.h.bf16 %v1701
      %v1759 = vunpack.c.l.bf16 %v1702
      %v1760 = vunpack.c.h.bf16 %v1702
      %v1761 = vunpack.c.l.bf16 %v1703
      %v1762 = vunpack.c.h.bf16 %v1703
      %v1763 = vunpack.c.l.bf16 %v1704
      %v1764 = vunpack.c.h.bf16 %v1704
      %v1765 = vunpack.c.l.bf16 %v1705
      %v1766 = vunpack.c.h.bf16 %v1705
      %v1767 = vunpack.c.l.bf16 %v1706
      %v1768 = vunpack.c.h.bf16 %v1706
      %v1769 = vunpack.c.l.bf16 %v1707
      %v1770 = vunpack.c.h.bf16 %v1707
      %v1771 = vunpack.c.l.bf16 %v1708
      %v1772 = vunpack.c.h.bf16 %v1708
      %v1774 = vperm.slane %v1676, 0
      %v1775 = vperm.slane %v1676, 1
      %v1778 = vmul.f32 %v1709, %v1774
      %v1779 = vmul.f32 %v1710, %v1775
      %v1780 = vmul.f32 %v1711, %v1774
      %v1781 = vmul.f32 %v1712, %v1775
      %v1782 = vmul.f32 %v1713, %v1774
      %v1783 = vmul.f32 %v1714, %v1775
      %v1784 = vmul.f32 %v1715, %v1774
      %v1785 = vmul.f32 %v1716, %v1775
      %v1786 = vmul.f32 %v1717, %v1774
      %v1787 = vmul.f32 %v1718, %v1775
      %v1788 = vmul.f32 %v1719, %v1774
      %v1789 = vmul.f32 %v1720, %v1775
      %v1790 = vmul.f32 %v1721, %v1774
      %v1791 = vmul.f32 %v1722, %v1775
      %v1792 = vmul.f32 %v1723, %v1774
      %v1793 = vmul.f32 %v1724, %v1775
      %v1794 = vmul.f32 %v1725, %v1774
      %v1795 = vmul.f32 %v1726, %v1775
      %v1796 = vmul.f32 %v1727, %v1774
      %v1797 = vmul.f32 %v1728, %v1775
      %v1798 = vmul.f32 %v1729, %v1774
      %v1799 = vmul.f32 %v1730, %v1775
      %v1800 = vmul.f32 %v1731, %v1774
      %v1801 = vmul.f32 %v1732, %v1775
      %v1802 = vmul.f32 %v1733, %v1774
      %v1803 = vmul.f32 %v1734, %v1775
      %v1804 = vmul.f32 %v1735, %v1774
      %v1805 = vmul.f32 %v1736, %v1775
      %v1806 = vmul.f32 %v1737, %v1774
      %v1807 = vmul.f32 %v1738, %v1775
      %v1808 = vmul.f32 %v1739, %v1774
      %v1809 = vmul.f32 %v1740, %v1775
      %v1810 = vmul.f32 %v1741, %v1774
      %v1811 = vmul.f32 %v1742, %v1775
      %v1812 = vmul.f32 %v1743, %v1774
      %v1813 = vmul.f32 %v1744, %v1775
      %v1814 = vmul.f32 %v1745, %v1774
      %v1815 = vmul.f32 %v1746, %v1775
      %v1816 = vmul.f32 %v1747, %v1774
      %v1817 = vmul.f32 %v1748, %v1775
      %v1818 = vmul.f32 %v1749, %v1774
      %v1819 = vmul.f32 %v1750, %v1775
      %v1820 = vmul.f32 %v1751, %v1774
      %v1821 = vmul.f32 %v1752, %v1775
      %v1822 = vmul.f32 %v1753, %v1774
      %v1823 = vmul.f32 %v1754, %v1775
      %v1824 = vmul.f32 %v1755, %v1774
      %v1825 = vmul.f32 %v1756, %v1775
      %v1826 = vmul.f32 %v1757, %v1774
      %v1827 = vmul.f32 %v1758, %v1775
      %v1828 = vmul.f32 %v1759, %v1774
      %v1829 = vmul.f32 %v1760, %v1775
      %v1830 = vmul.f32 %v1761, %v1774
      %v1831 = vmul.f32 %v1762, %v1775
      %v1832 = vmul.f32 %v1763, %v1774
      %v1833 = vmul.f32 %v1764, %v1775
      %v1834 = vmul.f32 %v1765, %v1774
      %v1835 = vmul.f32 %v1766, %v1775
      %v1836 = vmul.f32 %v1767, %v1774
      %v1837 = vmul.f32 %v1768, %v1775
      %v1838 = vmul.f32 %v1769, %v1774
      %v1839 = vmul.f32 %v1770, %v1775
      %v1840 = vmul.f32 %v1771, %v1774
      %v1841 = vmul.f32 %v1772, %v1775
      %s1842 = smul.addr %s1629, 4
      %s1843 = scalar_lea.vmem %s0, %s1842
      %v1844 = vld [vmem:[%s1843] sm:$0xff]
      %v1845 = vld [vmem:[%s1843 + $0x8] sm:$0xff]
      %v1846 = vld [vmem:[%s1843 + $0x10] sm:$0xff]
      %v1847 = vld [vmem:[%s1843 + $0x18] sm:$0xff]
      %v1848 = vld [vmem:[%s1843 + $0x20] sm:$0xff]
      %v1849 = vld [vmem:[%s1843 + $0x28] sm:$0xff]
      %v1850 = vld [vmem:[%s1843 + $0x30] sm:$0xff]
      %v1851 = vld [vmem:[%s1843 + $0x38] sm:$0xff]
      %v1852 = vld [vmem:[%s1843 + $0x40] sm:$0xff]
      %v1853 = vld [vmem:[%s1843 + $0x48] sm:$0xff]
      %v1854 = vld [vmem:[%s1843 + $0x50] sm:$0xff]
      %v1855 = vld [vmem:[%s1843 + $0x58] sm:$0xff]
      %v1856 = vld [vmem:[%s1843 + $0x60] sm:$0xff]
      %v1857 = vld [vmem:[%s1843 + $0x68] sm:$0xff]
      %v1858 = vld [vmem:[%s1843 + $0x70] sm:$0xff]
      %v1859 = vld [vmem:[%s1843 + $0x78] sm:$0xff]
      %v1860 = vld [vmem:[%s1843 + $0x80] sm:$0xff]
      %v1861 = vld [vmem:[%s1843 + $0x88] sm:$0xff]
      %v1862 = vld [vmem:[%s1843 + $0x90] sm:$0xff]
      %v1863 = vld [vmem:[%s1843 + $0x98] sm:$0xff]
      %v1864 = vld [vmem:[%s1843 + $0xa0] sm:$0xff]
      %v1865 = vld [vmem:[%s1843 + $0xa8] sm:$0xff]
      %v1866 = vld [vmem:[%s1843 + $0xb0] sm:$0xff]
      %v1867 = vld [vmem:[%s1843 + $0xb8] sm:$0xff]
      %v1868 = vld [vmem:[%s1843 + $0xc0] sm:$0xff]
      %v1869 = vld [vmem:[%s1843 + $0xc8] sm:$0xff]
      %v1870 = vld [vmem:[%s1843 + $0xd0] sm:$0xff]
      %v1871 = vld [vmem:[%s1843 + $0xd8] sm:$0xff]
      %v1872 = vld [vmem:[%s1843 + $0xe0] sm:$0xff]
      %v1873 = vld [vmem:[%s1843 + $0xe8] sm:$0xff]
      %v1874 = vld [vmem:[%s1843 + $0xf0] sm:$0xff]
      %v1875 = vld [vmem:[%s1843 + $0xf8] sm:$0xff]
      %v1876 = vunpack.c.l.bf16 %v1844
      %v1877 = vunpack.c.h.bf16 %v1844
      %v1878 = vunpack.c.l.bf16 %v1845
      %v1879 = vunpack.c.h.bf16 %v1845
      %v1880 = vunpack.c.l.bf16 %v1846
      %v1881 = vunpack.c.h.bf16 %v1846
      %v1882 = vunpack.c.l.bf16 %v1847
      %v1883 = vunpack.c.h.bf16 %v1847
      %v1884 = vunpack.c.l.bf16 %v1848
      %v1885 = vunpack.c.h.bf16 %v1848
      %v1886 = vunpack.c.l.bf16 %v1849
      %v1887 = vunpack.c.h.bf16 %v1849
      %v1888 = vunpack.c.l.bf16 %v1850
      %v1889 = vunpack.c.h.bf16 %v1850
      %v1890 = vunpack.c.l.bf16 %v1851
      %v1891 = vunpack.c.h.bf16 %v1851
      %v1892 = vunpack.c.l.bf16 %v1852
      %v1893 = vunpack.c.h.bf16 %v1852
      %v1894 = vunpack.c.l.bf16 %v1853
      %v1895 = vunpack.c.h.bf16 %v1853
      %v1896 = vunpack.c.l.bf16 %v1854
      %v1897 = vunpack.c.h.bf16 %v1854
      %v1898 = vunpack.c.l.bf16 %v1855
      %v1899 = vunpack.c.h.bf16 %v1855
      %v1900 = vunpack.c.l.bf16 %v1856
      %v1901 = vunpack.c.h.bf16 %v1856
      %v1902 = vunpack.c.l.bf16 %v1857
      %v1903 = vunpack.c.h.bf16 %v1857
      %v1904 = vunpack.c.l.bf16 %v1858
      %v1905 = vunpack.c.h.bf16 %v1858
      %v1906 = vunpack.c.l.bf16 %v1859
      %v1907 = vunpack.c.h.bf16 %v1859
      %v1908 = vunpack.c.l.bf16 %v1860
      %v1909 = vunpack.c.h.bf16 %v1860
      %v1910 = vunpack.c.l.bf16 %v1861
      %v1911 = vunpack.c.h.bf16 %v1861
      %v1912 = vunpack.c.l.bf16 %v1862
      %v1913 = vunpack.c.h.bf16 %v1862
      %v1914 = vunpack.c.l.bf16 %v1863
      %v1915 = vunpack.c.h.bf16 %v1863
      %v1916 = vunpack.c.l.bf16 %v1864
      %v1917 = vunpack.c.h.bf16 %v1864
      %v1918 = vunpack.c.l.bf16 %v1865
      %v1919 = vunpack.c.h.bf16 %v1865
      %v1920 = vunpack.c.l.bf16 %v1866
      %v1921 = vunpack.c.h.bf16 %v1866
      %v1922 = vunpack.c.l.bf16 %v1867
      %v1923 = vunpack.c.h.bf16 %v1867
      %v1924 = vunpack.c.l.bf16 %v1868
      %v1925 = vunpack.c.h.bf16 %v1868
      %v1926 = vunpack.c.l.bf16 %v1869
      %v1927 = vunpack.c.h.bf16 %v1869
      %v1928 = vunpack.c.l.bf16 %v1870
      %v1929 = vunpack.c.h.bf16 %v1870
      %v1930 = vunpack.c.l.bf16 %v1871
      %v1931 = vunpack.c.h.bf16 %v1871
      %v1932 = vunpack.c.l.bf16 %v1872
      %v1933 = vunpack.c.h.bf16 %v1872
      %v1934 = vunpack.c.l.bf16 %v1873
      %v1935 = vunpack.c.h.bf16 %v1873
      %v1936 = vunpack.c.l.bf16 %v1874
      %v1937 = vunpack.c.h.bf16 %v1874
      %v1938 = vunpack.c.l.bf16 %v1875
      %v1939 = vunpack.c.h.bf16 %v1875
      %v1940 = vadd.f32 %v1778, %v1876
      %v1941 = vadd.f32 %v1779, %v1877
      %v1942 = vadd.f32 %v1780, %v1878
      %v1943 = vadd.f32 %v1781, %v1879
      %v1944 = vadd.f32 %v1782, %v1880
      %v1945 = vadd.f32 %v1783, %v1881
      %v1946 = vadd.f32 %v1784, %v1882
      %v1947 = vadd.f32 %v1785, %v1883
      %v1948 = vadd.f32 %v1786, %v1884
      %v1949 = vadd.f32 %v1787, %v1885
      %v1950 = vadd.f32 %v1788, %v1886
      %v1951 = vadd.f32 %v1789, %v1887
      %v1952 = vadd.f32 %v1790, %v1888
      %v1953 = vadd.f32 %v1791, %v1889
      %v1954 = vadd.f32 %v1792, %v1890
      %v1955 = vadd.f32 %v1793, %v1891
      %v1956 = vadd.f32 %v1794, %v1892
      %v1957 = vadd.f32 %v1795, %v1893
      %v1958 = vadd.f32 %v1796, %v1894
      %v1959 = vadd.f32 %v1797, %v1895
      %v1960 = vadd.f32 %v1798, %v1896
      %v1961 = vadd.f32 %v1799, %v1897
      %v1962 = vadd.f32 %v1800, %v1898
      %v1963 = vadd.f32 %v1801, %v1899
      %v1964 = vadd.f32 %v1802, %v1900
      %v1965 = vadd.f32 %v1803, %v1901
      %v1966 = vadd.f32 %v1804, %v1902
      %v1967 = vadd.f32 %v1805, %v1903
      %v1968 = vadd.f32 %v1806, %v1904
      %v1969 = vadd.f32 %v1807, %v1905
      %v1970 = vadd.f32 %v1808, %v1906
      %v1971 = vadd.f32 %v1809, %v1907
      %v1972 = vadd.f32 %v1810, %v1908
      %v1973 = vadd.f32 %v1811, %v1909
      %v1974 = vadd.f32 %v1812, %v1910
      %v1975 = vadd.f32 %v1813, %v1911
      %v1976 = vadd.f32 %v1814, %v1912
      %v1977 = vadd.f32 %v1815, %v1913
      %v1978 = vadd.f32 %v1816, %v1914
      %v1979 = vadd.f32 %v1817, %v1915
      %v1980 = vadd.f32 %v1818, %v1916
      %v1981 = vadd.f32 %v1819, %v1917
      %v1982 = vadd.f32 %v1820, %v1918
      %v1983 = vadd.f32 %v1821, %v1919
      %v1984 = vadd.f32 %v1822, %v1920
      %v1985 = vadd.f32 %v1823, %v1921
      %v1986 = vadd.f32 %v1824, %v1922
      %v1987 = vadd.f32 %v1825, %v1923
      %v1988 = vadd.f32 %v1826, %v1924
      %v1989 = vadd.f32 %v1827, %v1925
      %v1990 = vadd.f32 %v1828, %v1926
      %v1991 = vadd.f32 %v1829, %v1927
      %v1992 = vadd.f32 %v1830, %v1928
      %v1993 = vadd.f32 %v1831, %v1929
      %v1994 = vadd.f32 %v1832, %v1930
      %v1995 = vadd.f32 %v1833, %v1931
      %v1996 = vadd.f32 %v1834, %v1932
      %v1997 = vadd.f32 %v1835, %v1933
      %v1998 = vadd.f32 %v1836, %v1934
      %v1999 = vadd.f32 %v1837, %v1935
      %v2000 = vadd.f32 %v1838, %v1936
      %v2001 = vadd.f32 %v1839, %v1937
      %v2002 = vadd.f32 %v1840, %v1938
      %v2003 = vadd.f32 %v1841, %v1939
      %v2004 = vpack.c.bf16 %v1941, %v1940
      %v2005 = vpack.c.bf16 %v1943, %v1942
      %v2006 = vpack.c.bf16 %v1945, %v1944
      %v2007 = vpack.c.bf16 %v1947, %v1946
      %v2008 = vpack.c.bf16 %v1949, %v1948
      %v2009 = vpack.c.bf16 %v1951, %v1950
      %v2010 = vpack.c.bf16 %v1953, %v1952
      %v2011 = vpack.c.bf16 %v1955, %v1954
      %v2012 = vpack.c.bf16 %v1957, %v1956
      %v2013 = vpack.c.bf16 %v1959, %v1958
      %v2014 = vpack.c.bf16 %v1961, %v1960
      %v2015 = vpack.c.bf16 %v1963, %v1962
      %v2016 = vpack.c.bf16 %v1965, %v1964
      %v2017 = vpack.c.bf16 %v1967, %v1966
      %v2018 = vpack.c.bf16 %v1969, %v1968
      %v2019 = vpack.c.bf16 %v1971, %v1970
      %v2020 = vpack.c.bf16 %v1973, %v1972
      %v2021 = vpack.c.bf16 %v1975, %v1974
      %v2022 = vpack.c.bf16 %v1977, %v1976
      %v2023 = vpack.c.bf16 %v1979, %v1978
      %v2024 = vpack.c.bf16 %v1981, %v1980
      %v2025 = vpack.c.bf16 %v1983, %v1982
      %v2026 = vpack.c.bf16 %v1985, %v1984
      %v2027 = vpack.c.bf16 %v1987, %v1986
      %v2028 = vpack.c.bf16 %v1989, %v1988
      %v2029 = vpack.c.bf16 %v1991, %v1990
      %v2030 = vpack.c.bf16 %v1993, %v1992
      %v2031 = vpack.c.bf16 %v1995, %v1994
      %v2032 = vpack.c.bf16 %v1997, %v1996
      %v2033 = vpack.c.bf16 %v1999, %v1998
      %v2034 = vpack.c.bf16 %v2001, %v2000
      %v2035 = vpack.c.bf16 %v2003, %v2002
      %2036 = vst [vmem:[%s1631] sm:$0xff] %v2004
      %2037 = vst [vmem:[%s1631 + $0x8] sm:$0xff] %v2005
      %2038 = vst [vmem:[%s1631 + $0x10] sm:$0xff] %v2006
      %2039 = vst [vmem:[%s1631 + $0x18] sm:$0xff] %v2007
      %2040 = vst [vmem:[%s1631 + $0x20] sm:$0xff] %v2008
      %2041 = vst [vmem:[%s1631 + $0x28] sm:$0xff] %v2009
      %2042 = vst [vmem:[%s1631 + $0x30] sm:$0xff] %v2010
      %2043 = vst [vmem:[%s1631 + $0x38] sm:$0xff] %v2011
      %2044 = vst [vmem:[%s1631 + $0x40] sm:$0xff] %v2012
      %2045 = vst [vmem:[%s1631 + $0x48] sm:$0xff] %v2013
      %2046 = vst [vmem:[%s1631 + $0x50] sm:$0xff] %v2014
      %2047 = vst [vmem:[%s1631 + $0x58] sm:$0xff] %v2015
      %2048 = vst [vmem:[%s1631 + $0x60] sm:$0xff] %v2016
      %2049 = vst [vmem:[%s1631 + $0x68] sm:$0xff] %v2017
      %2050 = vst [vmem:[%s1631 + $0x70] sm:$0xff] %v2018
      %2051 = vst [vmem:[%s1631 + $0x78] sm:$0xff] %v2019
      %2052 = vst [vmem:[%s1631 + $0x80] sm:$0xff] %v2020
      %2053 = vst [vmem:[%s1631 + $0x88] sm:$0xff] %v2021
      %2054 = vst [vmem:[%s1631 + $0x90] sm:$0xff] %v2022
      %2055 = vst [vmem:[%s1631 + $0x98] sm:$0xff] %v2023
      %2056 = vst [vmem:[%s1631 + $0xa0] sm:$0xff] %v2024
      %2057 = vst [vmem:[%s1631 + $0xa8] sm:$0xff] %v2025
      %2058 = vst [vmem:[%s1631 + $0xb0] sm:$0xff] %v2026
      %2059 = vst [vmem:[%s1631 + $0xb8] sm:$0xff] %v2027
      %2060 = vst [vmem:[%s1631 + $0xc0] sm:$0xff] %v2028
      %2061 = vst [vmem:[%s1631 + $0xc8] sm:$0xff] %v2029
      %2062 = vst [vmem:[%s1631 + $0xd0] sm:$0xff] %v2030
      %2063 = vst [vmem:[%s1631 + $0xd8] sm:$0xff] %v2031
      %2064 = vst [vmem:[%s1631 + $0xe0] sm:$0xff] %v2032
      %2065 = vst [vmem:[%s1631 + $0xe8] sm:$0xff] %v2033
      %2066 = vst [vmem:[%s1631 + $0xf0] sm:$0xff] %v2034
      %2067 = vst [vmem:[%s1631 + $0xf8] sm:$0xff] %v2035
      %v2068 = vld [vmem:[%s222] sm:$0xff]
      %2070 = vst [vmem:[#allocation1] ss:$2 sm:$0xff] %v2068
      %v2071 = vld.sshfl [vmem:[#allocation1] sm:$0xff pattern:$0x75316420]
      %v2072 = vld.sshfl [vmem:[#allocation1 + $0x8] sm:$0xff pattern:$0x75316420]
      %vm2075 = vcmask 1043456
      %v2076 = vsel %vm2075, %v2071, -inf
      %v2077 = vrot.slane %v2076, 4
      %v2078 = vmax.f32 %v2076, %v2077
      %v2079 = vrot.slane %v2078, 2
      %v2080 = vmax.f32 %v2078, %v2079
      %v2081 = vrot.slane %v2080, 1
      %v2082 = vmax.f32 %v2080, %v2081
      %v2083 = vsel %vm2075, %v2072, -inf
      %v2084 = vrot.slane %v2083, 4
      %v2085 = vmax.f32 %v2083, %v2084
      %v2086 = vrot.slane %v2085, 2
      %v2087 = vmax.f32 %v2085, %v2086
      %v2088 = vrot.slane %v2087, 1
      %v2089 = vmax.f32 %v2087, %v2088
      %v2092 = vrot.slane %v2089, 4
      %v2093 = vsel %vm2075, %v2082, %v2092
      %v2095 = vsub.f32 %v2068, %v2093
      %v2096 = vmul.f32 %v2095, 1.442695
      %v2097 = vpow.pop %v2096
      %2099 = vst [vmem:[#allocation1] ss:$2 sm:$0xff] %v2097
      %v2100 = vld.sshfl [vmem:[#allocation1] sm:$0xff pattern:$0x75316420]
      %v2101 = vld.sshfl [vmem:[#allocation1 + $0x8] sm:$0xff pattern:$0x75316420]
      %v2104 = vsel %vm2075, %v2100, 0.0
      %v2105 = vrot.slane %v2104, 4
      %v2106 = vadd.f32 %v2104, %v2105
      %v2107 = vrot.slane %v2106, 2
      %v2108 = vadd.f32 %v2106, %v2107
      %v2109 = vrot.slane %v2108, 1
      %v2110 = vadd.f32 %v2108, %v2109
      %v2111 = vsel %vm2075, %v2101, 0.0
      %v2112 = vrot.slane %v2111, 4
      %v2113 = vadd.f32 %v2111, %v2112
      %v2114 = vrot.slane %v2113, 2
      %v2115 = vadd.f32 %v2113, %v2114
      %v2116 = vrot.slane %v2115, 1
      %v2117 = vadd.f32 %v2115, %v2116
      %v2120 = vrot.slane %v2117, 4
      %v2121 = vsel %vm2075, %v2110, %v2120
      %v2123 = vrcp.pop %v2121
      %v2124 = vmul.f32 %v2121, %v2123
      %v2125 = vsub.f32 1.0, %v2124
      %v2126 = vmul.f32 %v2123, %v2125
      %v2127 = vadd.f32 %v2123, %v2126
      %vm2128 = vweird.f32 %v2121
      %vm2129 = vweird.f32 %v2123
      %vm2130 = vmor %vm2128, %vm2129
      %v2131 = vsel %vm2130, %v2123, %v2127
      %v2132 = vand.u32 2147483647, %v2121
      %vm2133 = vcmp.eq.f32.partialorder %v2132, 8.507059e+37
      %v2134 = vand.u32 %v2121, 2147483648
      %v2135 = vor.u32 1.1754944e-38, %v2134
      %v2136 = vsel %vm2133, %v2135, %v2131
      %v2137 = vmul.f32 %v2097, %v2136
      %v2138 = vmax.f32 %v2137, 1e-05
      %v2139 = vmin.f32 %v2138, 1.0
      %v2140 = vlog2.pop %v2139
      %v2141 = vmul.f32 %v2140, 0.6931472
      %v2142 = vsub.f32 0.0, %v2141
      %v2143 = vsub.f32 0.0, %v2142
      %2145 = vst [vmem:[#allocation1] ss:$2 sm:$0xff] %v2143
      %v2146 = vld.sshfl [vmem:[#allocation1] sm:$0xff pattern:$0x75316420]
      %v2147 = vld.sshfl [vmem:[#allocation1 + $0x8] sm:$0xff pattern:$0x75316420]
      %v2150 = vsel %vm2075, %v2146, -inf
      %v2151 = vrot.slane %v2150, 4
      %v2152 = vmax.f32 %v2150, %v2151
      %v2153 = vrot.slane %v2152, 2
      %v2154 = vmax.f32 %v2152, %v2153
      %v2155 = vrot.slane %v2154, 1
      %v2156 = vmax.f32 %v2154, %v2155
      %v2157 = vsel %vm2075, %v2147, -inf
      %v2158 = vrot.slane %v2157, 4
      %v2159 = vmax.f32 %v2157, %v2158
      %v2160 = vrot.slane %v2159, 2
      %v2161 = vmax.f32 %v2159, %v2160
      %v2162 = vrot.slane %v2161, 1
      %v2163 = vmax.f32 %v2161, %v2162
      %v2166 = vrot.slane %v2163, 4
      %v2167 = vsel %vm2075, %v2156, %v2166
      %v2169 = vsub.f32 %v2143, %v2167
      %v2170 = vmul.f32 %v2169, 1.442695
      %v2171 = vpow.pop %v2170
      %2173 = vst [vmem:[#allocation1] ss:$2 sm:$0xff] %v2171
      %v2174 = vld.sshfl [vmem:[#allocation1] sm:$0xff pattern:$0x75316420]
      %v2175 = vld.sshfl [vmem:[#allocation1 + $0x8] sm:$0xff pattern:$0x75316420]
      %v2178 = vsel %vm2075, %v2174, 0.0
      %v2179 = vrot.slane %v2178, 4
      %v2180 = vadd.f32 %v2178, %v2179
      %v2181 = vrot.slane %v2180, 2
      %v2182 = vadd.f32 %v2180, %v2181
      %v2183 = vrot.slane %v2182, 1
      %v2184 = vadd.f32 %v2182, %v2183
      %v2185 = vsel %vm2075, %v2175, 0.0
      %v2186 = vrot.slane %v2185, 4
      %v2187 = vadd.f32 %v2185, %v2186
      %v2188 = vrot.slane %v2187, 2
      %v2189 = vadd.f32 %v2187, %v2188
      %v2190 = vrot.slane %v2189, 1
      %v2191 = vadd.f32 %v2189, %v2190
      %v2192 = vrcp.pop %v2184
      %v2193 = vrcp.pop %v2191
      %v2196 = vrot.slane %v2193, 4
      %v2197 = vsel %vm2075, %v2192, %v2196
      %v2199 = vmul.f32 %v2171, %v2197
      loop: start=0, step=1, limit=9
      $region37: #{dense_crf.1} parent=35 // loop_pre_header
        _
      $region38: #{dense_crf.1} parent=35 // loop_header
        %s2201 = sphi 0, %s2205
        %p2202 = scmp.ge.s32.totalorder %s2201, 9
        %v2206 = vphi %v2199, %v2520
      $region39: #{dense_crf.1} parent=35 // loop_header_branch
        %2204 = sbr.rel (%p2202) target = $region43
      $region40: #{dense_crf.1} parent=35 // loop_body
        %2208 = vst [vmem:[#allocation1] ss:$2 sm:$0xff] %v2206
        %v2209 = vld.sshfl [vmem:[#allocation1] sm:$0xff pattern:$0x75316420]
        %v2210 = vld.sshfl [vmem:[#allocation1 + $0x8] sm:$0xff pattern:$0x75316420]
        %v2213 = vpack.c.bf16 %v2209, %v2209
        %v2214 = vpack.c.bf16 %v2210, %v2210
        %v2215 = vld [vmem:[#allocation2] sm:$0xff]
        %v2216 = vld [vmem:[#allocation2 + $0x8] sm:$0xff]
        %v2217 = vld [vmem:[#allocation2 + $0x10] sm:$0xff]
        %v2218 = vld [vmem:[#allocation2 + $0x18] sm:$0xff]
        %v2219 = vld [vmem:[#allocation2 + $0x20] sm:$0xff]
        %v2220 = vld [vmem:[#allocation2 + $0x28] sm:$0xff]
        %v2221 = vld [vmem:[#allocation2 + $0x30] sm:$0xff]
        %v2222 = vld [vmem:[#allocation2 + $0x38] sm:$0xff]
        %v2223 = vld [vmem:[#allocation2 + $0x40] sm:$0xff]
        %v2224 = vld [vmem:[#allocation2 + $0x48] sm:$0xff]
        %v2225 = vld [vmem:[#allocation2 + $0x50] sm:$0xff]
        %v2226 = vld [vmem:[#allocation2 + $0x58] sm:$0xff]
        %v2227 = vld [vmem:[#allocation2 + $0x60] sm:$0xff]
        %v2228 = vld [vmem:[#allocation2 + $0x68] sm:$0xff]
        %v2229 = vld [vmem:[#allocation2 + $0x70] sm:$0xff]
        %v2230 = vld [vmem:[#allocation2 + $0x78] sm:$0xff]
        %v2231 = vld [vmem:[#allocation2 + $0x80] sm:$0xff]
        %v2232 = vld [vmem:[#allocation2 + $0x88] sm:$0xff]
        %v2233 = vld [vmem:[#allocation2 + $0x90] sm:$0xff]
        %v2234 = vld [vmem:[#allocation2 + $0x98] sm:$0xff]
        %v2235 = vld [vmem:[#allocation2 + $0xa0] sm:$0xff]
        %v2236 = vld [vmem:[#allocation2 + $0xa8] sm:$0xff]
        %v2237 = vld [vmem:[#allocation2 + $0xb0] sm:$0xff]
        %v2238 = vld [vmem:[#allocation2 + $0xb8] sm:$0xff]
        %v2239 = vld [vmem:[#allocation2 + $0xc0] sm:$0xff]
        %v2240 = vld [vmem:[#allocation2 + $0xc8] sm:$0xff]
        %v2241 = vld [vmem:[#allocation2 + $0xd0] sm:$0xff]
        %v2242 = vld [vmem:[#allocation2 + $0xd8] sm:$0xff]
        %v2243 = vld [vmem:[#allocation2 + $0xe0] sm:$0xff]
        %v2244 = vld [vmem:[#allocation2 + $0xe8] sm:$0xff]
        %v2245 = vld [vmem:[#allocation2 + $0xf0] sm:$0xff]
        %v2246 = vld [vmem:[#allocation2 + $0xf8] sm:$0xff]
        %v2279 = vunpack.c.l.b16 %v2215
        %v2280 = vunpack.c.h.b16 %v2215
        %v2281 = vunpack.c.l.b16 %v2216
        %v2282 = vunpack.c.h.b16 %v2216
        %v2283 = vunpack.c.l.b16 %v2217
        %v2284 = vunpack.c.h.b16 %v2217
        %v2285 = vunpack.c.l.b16 %v2218
        %v2286 = vunpack.c.h.b16 %v2218
        %v2287 = vunpack.c.l.b16 %v2219
        %v2288 = vunpack.c.h.b16 %v2219
        %v2289 = vunpack.c.l.b16 %v2220
        %v2290 = vunpack.c.h.b16 %v2220
        %v2291 = vunpack.c.l.b16 %v2221
        %v2292 = vunpack.c.h.b16 %v2221
        %v2293 = vunpack.c.l.b16 %v2222
        %v2294 = vunpack.c.h.b16 %v2222
        %v2295 = vunpack.c.l.b16 %v2223
        %v2296 = vunpack.c.h.b16 %v2223
        %v2297 = vunpack.c.l.b16 %v2224
        %v2298 = vunpack.c.h.b16 %v2224
        %v2299 = vunpack.c.l.b16 %v2225
        %v2300 = vunpack.c.h.b16 %v2225
        %v2301 = vunpack.c.l.b16 %v2226
        %v2302 = vunpack.c.h.b16 %v2226
        %v2303 = vunpack.c.l.b16 %v2227
        %v2304 = vunpack.c.h.b16 %v2227
        %v2305 = vunpack.c.l.b16 %v2228
        %v2306 = vunpack.c.h.b16 %v2228
        %v2307 = vunpack.c.l.b16 %v2229
        %v2308 = vunpack.c.h.b16 %v2229
        %v2309 = vunpack.c.l.b16 %v2230
        %v2310 = vunpack.c.h.b16 %v2230
        %v2311 = vunpack.c.l.b16 %v2231
        %v2312 = vunpack.c.h.b16 %v2231
        %v2313 = vunpack.c.l.b16 %v2232
        %v2314 = vunpack.c.h.b16 %v2232
        %v2315 = vunpack.c.l.b16 %v2233
        %v2316 = vunpack.c.h.b16 %v2233
        %v2317 = vunpack.c.l.b16 %v2234
        %v2318 = vunpack.c.h.b16 %v2234
        %v2319 = vunpack.c.l.b16 %v2235
        %v2320 = vunpack.c.h.b16 %v2235
        %v2321 = vunpack.c.l.b16 %v2236
        %v2322 = vunpack.c.h.b16 %v2236
        %v2323 = vunpack.c.l.b16 %v2237
        %v2324 = vunpack.c.h.b16 %v2237
        %v2325 = vunpack.c.l.b16 %v2238
        %v2326 = vunpack.c.h.b16 %v2238
        %v2327 = vunpack.c.l.b16 %v2239
        %v2328 = vunpack.c.h.b16 %v2239
        %v2329 = vunpack.c.l.b16 %v2240
        %v2330 = vunpack.c.h.b16 %v2240
        %v2331 = vunpack.c.l.b16 %v2241
        %v2332 = vunpack.c.h.b16 %v2241
        %v2333 = vunpack.c.l.b16 %v2242
        %v2334 = vunpack.c.h.b16 %v2242
        %v2335 = vunpack.c.l.b16 %v2243
        %v2336 = vunpack.c.h.b16 %v2243
        %v2337 = vunpack.c.l.b16 %v2244
        %v2338 = vunpack.c.h.b16 %v2244
        %v2339 = vunpack.c.l.b16 %v2245
        %v2340 = vunpack.c.h.b16 %v2245
        %v2341 = vunpack.c.l.b16 %v2246
        %v2342 = vunpack.c.h.b16 %v2246
        %v2343 = vpack.c.b16 %v2281, %v2279
        %v2344 = vpack.c.b16 %v2282, %v2280
        %v2345 = vpack.c.b16 %v2285, %v2283
        %v2346 = vpack.c.b16 %v2286, %v2284
        %v2347 = vpack.c.b16 %v2289, %v2287
        %v2348 = vpack.c.b16 %v2290, %v2288
        %v2349 = vpack.c.b16 %v2293, %v2291
        %v2350 = vpack.c.b16 %v2294, %v2292
        %v2351 = vpack.c.b16 %v2297, %v2295
        %v2352 = vpack.c.b16 %v2298, %v2296
        %v2353 = vpack.c.b16 %v2301, %v2299
        %v2354 = vpack.c.b16 %v2302, %v2300
        %v2355 = vpack.c.b16 %v2305, %v2303
        %v2356 = vpack.c.b16 %v2306, %v2304
        %v2357 = vpack.c.b16 %v2309, %v2307
        %v2358 = vpack.c.b16 %v2310, %v2308
        %v2359 = vpack.c.b16 %v2313, %v2311
        %v2360 = vpack.c.b16 %v2314, %v2312
        %v2361 = vpack.c.b16 %v2317, %v2315
        %v2362 = vpack.c.b16 %v2318, %v2316
        %v2363 = vpack.c.b16 %v2321, %v2319
        %v2364 = vpack.c.b16 %v2322, %v2320
        %v2365 = vpack.c.b16 %v2325, %v2323
        %v2366 = vpack.c.b16 %v2326, %v2324
        %v2367 = vpack.c.b16 %v2329, %v2327
        %v2368 = vpack.c.b16 %v2330, %v2328
        %v2369 = vpack.c.b16 %v2333, %v2331
        %v2370 = vpack.c.b16 %v2334, %v2332
        %v2371 = vpack.c.b16 %v2337, %v2335
        %v2372 = vpack.c.b16 %v2338, %v2336
        %v2373 = vpack.c.b16 %v2341, %v2339
        %v2374 = vpack.c.b16 %v2342, %v2340
        %2407 = vmatpush.bf16.msra.mxu0 %v2357
        %2408 = vmatpush.bf16.msra.mxu0 %v2355
        %2409 = vmatpush.bf16.msra.mxu0 %v2353
        %2410 = vmatpush.bf16.msra.mxu0 %v2351
        %2411 = vmatpush.bf16.msra.mxu0 %v2349
        %2412 = vmatpush.bf16.msra.mxu0 %v2347
        %2413 = vmatpush.bf16.msra.mxu0 %v2345
        %2414 = vmatpush.bf16.msra.mxu0 %v2343
        %2415 = vmatmul.bf16.gmra.mxu0 %v2213
        %v2416 = vpop.f32.mrf.mxu0
        %v2417 = vadd.f32 0.0, %v2416
        %v2418 = vpop.f32.mrf.mxu0
        %2419 = vdwg.mxu0
        %2420 = vmatpush.bf16.msra.mxu0 %v2373
        %2421 = vmatpush.bf16.msra.mxu0 %v2371
        %2422 = vmatpush.bf16.msra.mxu0 %v2369
        %2423 = vmatpush.bf16.msra.mxu0 %v2367
        %2424 = vmatpush.bf16.msra.mxu0 %v2365
        %2425 = vmatpush.bf16.msra.mxu0 %v2363
        %2426 = vmatpush.bf16.msra.mxu0 %v2361
        %2427 = vmatpush.bf16.msra.mxu0 %v2359
        %2428 = vmatmul.bf16.gmra.mxu0 %v2214
        %v2429 = vpop.f32.mrf.mxu0
        %v2430 = vadd.f32 %v2417, %v2429
        %v2431 = vpop.f32.mrf.mxu0
        %2432 = vdwg.mxu0
        %2433 = vmatpush.bf16.msra.mxu0 %v2358
        %2434 = vmatpush.bf16.msra.mxu0 %v2356
        %2435 = vmatpush.bf16.msra.mxu0 %v2354
        %2436 = vmatpush.bf16.msra.mxu0 %v2352
        %2437 = vmatpush.bf16.msra.mxu0 %v2350
        %2438 = vmatpush.bf16.msra.mxu0 %v2348
        %2439 = vmatpush.bf16.msra.mxu0 %v2346
        %2440 = vmatpush.bf16.msra.mxu0 %v2344
        %2441 = vmatmul.bf16.gmra.mxu0 %v2213
        %v2442 = vpop.f32.mrf.mxu0
        %v2443 = vadd.f32 0.0, %v2442
        %v2444 = vpop.f32.mrf.mxu0
        %2445 = vdwg.mxu0
        %2446 = vmatpush.bf16.msra.mxu0 %v2374
        %2447 = vmatpush.bf16.msra.mxu0 %v2372
        %2448 = vmatpush.bf16.msra.mxu0 %v2370
        %2449 = vmatpush.bf16.msra.mxu0 %v2368
        %2450 = vmatpush.bf16.msra.mxu0 %v2366
        %2451 = vmatpush.bf16.msra.mxu0 %v2364
        %2452 = vmatpush.bf16.msra.mxu0 %v2362
        %2453 = vmatpush.bf16.msra.mxu0 %v2360
        %2454 = vmatmul.bf16.gmra.mxu0 %v2214
        %v2455 = vpop.f32.mrf.mxu0
        %v2456 = vadd.f32 %v2443, %v2455
        %v2457 = vpop.f32.mrf.mxu0
        %2458 = vdwg.mxu0
        %v2461 = vrot.slane %v2456, 4
        %v2462 = vsel %vm2075, %v2430, %v2461
        %v2464 = vadd.f32 %v2143, %v2462
        %2466 = vst [vmem:[#allocation1] ss:$2 sm:$0xff] %v2464
        %v2467 = vld.sshfl [vmem:[#allocation1] sm:$0xff pattern:$0x75316420]
        %v2468 = vld.sshfl [vmem:[#allocation1 + $0x8] sm:$0xff pattern:$0x75316420]
        %v2471 = vsel %vm2075, %v2467, -inf
        %v2472 = vrot.slane %v2471, 4
        %v2473 = vmax.f32 %v2471, %v2472
        %v2474 = vrot.slane %v2473, 2
        %v2475 = vmax.f32 %v2473, %v2474
        %v2476 = vrot.slane %v2475, 1
        %v2477 = vmax.f32 %v2475, %v2476
        %v2478 = vsel %vm2075, %v2468, -inf
        %v2479 = vrot.slane %v2478, 4
        %v2480 = vmax.f32 %v2478, %v2479
        %v2481 = vrot.slane %v2480, 2
        %v2482 = vmax.f32 %v2480, %v2481
        %v2483 = vrot.slane %v2482, 1
        %v2484 = vmax.f32 %v2482, %v2483
        %v2487 = vrot.slane %v2484, 4
        %v2488 = vsel %vm2075, %v2477, %v2487
        %v2490 = vsub.f32 %v2464, %v2488
        %v2491 = vmul.f32 %v2490, 1.442695
        %v2492 = vpow.pop %v2491
        %2494 = vst [vmem:[#allocation1] ss:$2 sm:$0xff] %v2492
        %v2495 = vld.sshfl [vmem:[#allocation1] sm:$0xff pattern:$0x75316420]
        %v2496 = vld.sshfl [vmem:[#allocation1 + $0x8] sm:$0xff pattern:$0x75316420]
        %v2499 = vsel %vm2075, %v2495, 0.0
        %v2500 = vrot.slane %v2499, 4
        %v2501 = vadd.f32 %v2499, %v2500
        %v2502 = vrot.slane %v2501, 2
        %v2503 = vadd.f32 %v2501, %v2502
        %v2504 = vrot.slane %v2503, 1
        %v2505 = vadd.f32 %v2503, %v2504
        %v2506 = vsel %vm2075, %v2496, 0.0
        %v2507 = vrot.slane %v2506, 4
        %v2508 = vadd.f32 %v2506, %v2507
        %v2509 = vrot.slane %v2508, 2
        %v2510 = vadd.f32 %v2508, %v2509
        %v2511 = vrot.slane %v2510, 1
        %v2512 = vadd.f32 %v2510, %v2511
        %v2513 = vrcp.pop %v2505
        %v2514 = vrcp.pop %v2512
        %v2517 = vrot.slane %v2514, 4
        %v2518 = vsel %vm2075, %v2513, %v2517
        %v2520 = vmul.f32 %v2492, %v2518
      $region41: #{dense_crf.1} parent=35 // loop_footer
        %s2205 = sadd.s32 1, %s2201
      $region42: #{dense_crf.1} parent=35 // loop_footer_branch
        %2200 = sbr.rel target = $region38
      $region43: #{dense_crf.1} parent=35 // loop_exit
        _
      %2522 = vst [vmem:[#allocation1] ss:$2 sm:$0xff] %v2206
      %v2523 = vld.sshfl [vmem:[#allocation1] sm:$0xff pattern:$0x75316420]
      %v2524 = vld.sshfl [vmem:[#allocation1 + $0x8] sm:$0xff pattern:$0x75316420]
      %v2527 = vpack.c.bf16 %v2523, %v2523
      %v2528 = vpack.c.bf16 %v2524, %v2524
      %v2529 = vld [vmem:[#allocation2] sm:$0xff]
      %v2530 = vld [vmem:[#allocation2 + $0x8] sm:$0xff]
      %v2531 = vld [vmem:[#allocation2 + $0x10] sm:$0xff]
      %v2532 = vld [vmem:[#allocation2 + $0x18] sm:$0xff]
      %v2533 = vld [vmem:[#allocation2 + $0x20] sm:$0xff]
      %v2534 = vld [vmem:[#allocation2 + $0x28] sm:$0xff]
      %v2535 = vld [vmem:[#allocation2 + $0x30] sm:$0xff]
      %v2536 = vld [vmem:[#allocation2 + $0x38] sm:$0xff]
      %v2537 = vld [vmem:[#allocation2 + $0x40] sm:$0xff]
      %v2538 = vld [vmem:[#allocation2 + $0x48] sm:$0xff]
      %v2539 = vld [vmem:[#allocation2 + $0x50] sm:$0xff]
      %v2540 = vld [vmem:[#allocation2 + $0x58] sm:$0xff]
      %v2541 = vld [vmem:[#allocation2 + $0x60] sm:$0xff]
      %v2542 = vld [vmem:[#allocation2 + $0x68] sm:$0xff]
      %v2543 = vld [vmem:[#allocation2 + $0x70] sm:$0xff]
      %v2544 = vld [vmem:[#allocation2 + $0x78] sm:$0xff]
      %v2545 = vld [vmem:[#allocation2 + $0x80] sm:$0xff]
      %v2546 = vld [vmem:[#allocation2 + $0x88] sm:$0xff]
      %v2547 = vld [vmem:[#allocation2 + $0x90] sm:$0xff]
      %v2548 = vld [vmem:[#allocation2 + $0x98] sm:$0xff]
      %v2549 = vld [vmem:[#allocation2 + $0xa0] sm:$0xff]
      %v2550 = vld [vmem:[#allocation2 + $0xa8] sm:$0xff]
      %v2551 = vld [vmem:[#allocation2 + $0xb0] sm:$0xff]
      %v2552 = vld [vmem:[#allocation2 + $0xb8] sm:$0xff]
      %v2553 = vld [vmem:[#allocation2 + $0xc0] sm:$0xff]
      %v2554 = vld [vmem:[#allocation2 + $0xc8] sm:$0xff]
      %v2555 = vld [vmem:[#allocation2 + $0xd0] sm:$0xff]
      %v2556 = vld [vmem:[#allocation2 + $0xd8] sm:$0xff]
      %v2557 = vld [vmem:[#allocation2 + $0xe0] sm:$0xff]
      %v2558 = vld [vmem:[#allocation2 + $0xe8] sm:$0xff]
      %v2559 = vld [vmem:[#allocation2 + $0xf0] sm:$0xff]
      %v2560 = vld [vmem:[#allocation2 + $0xf8] sm:$0xff]
      %v2593 = vunpack.c.l.b16 %v2529
      %v2594 = vunpack.c.h.b16 %v2529
      %v2595 = vunpack.c.l.b16 %v2530
      %v2596 = vunpack.c.h.b16 %v2530
      %v2597 = vunpack.c.l.b16 %v2531
      %v2598 = vunpack.c.h.b16 %v2531
      %v2599 = vunpack.c.l.b16 %v2532
      %v2600 = vunpack.c.h.b16 %v2532
      %v2601 = vunpack.c.l.b16 %v2533
      %v2602 = vunpack.c.h.b16 %v2533
      %v2603 = vunpack.c.l.b16 %v2534
      %v2604 = vunpack.c.h.b16 %v2534
      %v2605 = vunpack.c.l.b16 %v2535
      %v2606 = vunpack.c.h.b16 %v2535
      %v2607 = vunpack.c.l.b16 %v2536
      %v2608 = vunpack.c.h.b16 %v2536
      %v2609 = vunpack.c.l.b16 %v2537
      %v2610 = vunpack.c.h.b16 %v2537
      %v2611 = vunpack.c.l.b16 %v2538
      %v2612 = vunpack.c.h.b16 %v2538
      %v2613 = vunpack.c.l.b16 %v2539
      %v2614 = vunpack.c.h.b16 %v2539
      %v2615 = vunpack.c.l.b16 %v2540
      %v2616 = vunpack.c.h.b16 %v2540
      %v2617 = vunpack.c.l.b16 %v2541
      %v2618 = vunpack.c.h.b16 %v2541
      %v2619 = vunpack.c.l.b16 %v2542
      %v2620 = vunpack.c.h.b16 %v2542
      %v2621 = vunpack.c.l.b16 %v2543
      %v2622 = vunpack.c.h.b16 %v2543
      %v2623 = vunpack.c.l.b16 %v2544
      %v2624 = vunpack.c.h.b16 %v2544
      %v2625 = vunpack.c.l.b16 %v2545
      %v2626 = vunpack.c.h.b16 %v2545
      %v2627 = vunpack.c.l.b16 %v2546
      %v2628 = vunpack.c.h.b16 %v2546
      %v2629 = vunpack.c.l.b16 %v2547
      %v2630 = vunpack.c.h.b16 %v2547
      %v2631 = vunpack.c.l.b16 %v2548
      %v2632 = vunpack.c.h.b16 %v2548
      %v2633 = vunpack.c.l.b16 %v2549
      %v2634 = vunpack.c.h.b16 %v2549
      %v2635 = vunpack.c.l.b16 %v2550
      %v2636 = vunpack.c.h.b16 %v2550
      %v2637 = vunpack.c.l.b16 %v2551
      %v2638 = vunpack.c.h.b16 %v2551
      %v2639 = vunpack.c.l.b16 %v2552
      %v2640 = vunpack.c.h.b16 %v2552
      %v2641 = vunpack.c.l.b16 %v2553
      %v2642 = vunpack.c.h.b16 %v2553
      %v2643 = vunpack.c.l.b16 %v2554
      %v2644 = vunpack.c.h.b16 %v2554
      %v2645 = vunpack.c.l.b16 %v2555
      %v2646 = vunpack.c.h.b16 %v2555
      %v2647 = vunpack.c.l.b16 %v2556
      %v2648 = vunpack.c.h.b16 %v2556
      %v2649 = vunpack.c.l.b16 %v2557
      %v2650 = vunpack.c.h.b16 %v2557
      %v2651 = vunpack.c.l.b16 %v2558
      %v2652 = vunpack.c.h.b16 %v2558
      %v2653 = vunpack.c.l.b16 %v2559
      %v2654 = vunpack.c.h.b16 %v2559
      %v2655 = vunpack.c.l.b16 %v2560
      %v2656 = vunpack.c.h.b16 %v2560
      %v2657 = vpack.c.b16 %v2595, %v2593
      %v2658 = vpack.c.b16 %v2596, %v2594
      %v2659 = vpack.c.b16 %v2599, %v2597
      %v2660 = vpack.c.b16 %v2600, %v2598
      %v2661 = vpack.c.b16 %v2603, %v2601
      %v2662 = vpack.c.b16 %v2604, %v2602
      %v2663 = vpack.c.b16 %v2607, %v2605
      %v2664 = vpack.c.b16 %v2608, %v2606
      %v2665 = vpack.c.b16 %v2611, %v2609
      %v2666 = vpack.c.b16 %v2612, %v2610
      %v2667 = vpack.c.b16 %v2615, %v2613
      %v2668 = vpack.c.b16 %v2616, %v2614
      %v2669 = vpack.c.b16 %v2619, %v2617
      %v2670 = vpack.c.b16 %v2620, %v2618
      %v2671 = vpack.c.b16 %v2623, %v2621
      %v2672 = vpack.c.b16 %v2624, %v2622
      %v2673 = vpack.c.b16 %v2627, %v2625
      %v2674 = vpack.c.b16 %v2628, %v2626
      %v2675 = vpack.c.b16 %v2631, %v2629
      %v2676 = vpack.c.b16 %v2632, %v2630
      %v2677 = vpack.c.b16 %v2635, %v2633
      %v2678 = vpack.c.b16 %v2636, %v2634
      %v2679 = vpack.c.b16 %v2639, %v2637
      %v2680 = vpack.c.b16 %v2640, %v2638
      %v2681 = vpack.c.b16 %v2643, %v2641
      %v2682 = vpack.c.b16 %v2644, %v2642
      %v2683 = vpack.c.b16 %v2647, %v2645
      %v2684 = vpack.c.b16 %v2648, %v2646
      %v2685 = vpack.c.b16 %v2651, %v2649
      %v2686 = vpack.c.b16 %v2652, %v2650
      %v2687 = vpack.c.b16 %v2655, %v2653
      %v2688 = vpack.c.b16 %v2656, %v2654
      %2721 = vmatpush.bf16.msra.mxu0 %v2671
      %2722 = vmatpush.bf16.msra.mxu0 %v2669
      %2723 = vmatpush.bf16.msra.mxu0 %v2667
      %2724 = vmatpush.bf16.msra.mxu0 %v2665
      %2725 = vmatpush.bf16.msra.mxu0 %v2663
      %2726 = vmatpush.bf16.msra.mxu0 %v2661
      %2727 = vmatpush.bf16.msra.mxu0 %v2659
      %2728 = vmatpush.bf16.msra.mxu0 %v2657
      %2729 = vmatmul.bf16.gmra.mxu0 %v2527
      %v2730 = vpop.f32.mrf.mxu0
      %v2731 = vadd.f32 0.0, %v2730
      %v2732 = vpop.f32.mrf.mxu0
      %2733 = vdwg.mxu0
      %2734 = vmatpush.bf16.msra.mxu0 %v2687
      %2735 = vmatpush.bf16.msra.mxu0 %v2685
      %2736 = vmatpush.bf16.msra.mxu0 %v2683
      %2737 = vmatpush.bf16.msra.mxu0 %v2681
      %2738 = vmatpush.bf16.msra.mxu0 %v2679
      %2739 = vmatpush.bf16.msra.mxu0 %v2677
      %2740 = vmatpush.bf16.msra.mxu0 %v2675
      %2741 = vmatpush.bf16.msra.mxu0 %v2673
      %2742 = vmatmul.bf16.gmra.mxu0 %v2528
      %v2743 = vpop.f32.mrf.mxu0
      %v2744 = vadd.f32 %v2731, %v2743
      %v2745 = vpop.f32.mrf.mxu0
      %2746 = vdwg.mxu0
      %2747 = vmatpush.bf16.msra.mxu0 %v2672
      %2748 = vmatpush.bf16.msra.mxu0 %v2670
      %2749 = vmatpush.bf16.msra.mxu0 %v2668
      %2750 = vmatpush.bf16.msra.mxu0 %v2666
      %2751 = vmatpush.bf16.msra.mxu0 %v2664
      %2752 = vmatpush.bf16.msra.mxu0 %v2662
      %2753 = vmatpush.bf16.msra.mxu0 %v2660
      %2754 = vmatpush.bf16.msra.mxu0 %v2658
      %2755 = vmatmul.bf16.gmra.mxu0 %v2527
      %v2756 = vpop.f32.mrf.mxu0
      %v2757 = vadd.f32 0.0, %v2756
      %v2758 = vpop.f32.mrf.mxu0
      %2759 = vdwg.mxu0
      %2760 = vmatpush.bf16.msra.mxu0 %v2688
      %2761 = vmatpush.bf16.msra.mxu0 %v2686
      %2762 = vmatpush.bf16.msra.mxu0 %v2684
      %2763 = vmatpush.bf16.msra.mxu0 %v2682
      %2764 = vmatpush.bf16.msra.mxu0 %v2680
      %2765 = vmatpush.bf16.msra.mxu0 %v2678
      %2766 = vmatpush.bf16.msra.mxu0 %v2676
      %2767 = vmatpush.bf16.msra.mxu0 %v2674
      %2768 = vmatmul.bf16.gmra.mxu0 %v2528
      %v2769 = vpop.f32.mrf.mxu0
      %v2770 = vadd.f32 %v2757, %v2769
      %v2771 = vpop.f32.mrf.mxu0
      %2772 = vdwg.mxu0
      %v2775 = vrot.slane %v2770, 4
      %v2776 = vsel %vm2075, %v2744, %v2775
      %v2778 = vadd.f32 %v2143, %v2776
      %2780 = vst [vmem:[#allocation1] ss:$2 sm:$0xff] %v2778
      %v2781 = vld.sshfl [vmem:[#allocation1] sm:$0xff pattern:$0x75316420]
      %v2782 = vld.sshfl [vmem:[#allocation1 + $0x8] sm:$0xff pattern:$0x75316420]
      %v2785 = vsel %vm2075, %v2781, -inf
      %v2786 = vrot.slane %v2785, 4
      %v2787 = vmax.f32 %v2785, %v2786
      %v2788 = vrot.slane %v2787, 2
      %v2789 = vmax.f32 %v2787, %v2788
      %v2790 = vrot.slane %v2789, 1
      %v2791 = vmax.f32 %v2789, %v2790
      %v2792 = vsel %vm2075, %v2782, -inf
      %v2793 = vrot.slane %v2792, 4
      %v2794 = vmax.f32 %v2792, %v2793
      %v2795 = vrot.slane %v2794, 2
      %v2796 = vmax.f32 %v2794, %v2795
      %v2797 = vrot.slane %v2796, 1
      %v2798 = vmax.f32 %v2796, %v2797
      %v2801 = vrot.slane %v2798, 4
      %v2802 = vsel %vm2075, %v2791, %v2801
      %v2804 = vsub.f32 %v2778, %v2802
      %v2805 = vmul.f32 %v2804, 1.442695
      %v2806 = vpow.pop %v2805
      %2808 = vst [vmem:[#allocation1] ss:$2 sm:$0xff] %v2806
      %v2809 = vld.sshfl [vmem:[#allocation1] sm:$0xff pattern:$0x75316420]
      %v2810 = vld.sshfl [vmem:[#allocation1 + $0x8] sm:$0xff pattern:$0x75316420]
      %v2813 = vsel %vm2075, %v2809, 0.0
      %v2814 = vrot.slane %v2813, 4
      %v2815 = vadd.f32 %v2813, %v2814
      %v2816 = vrot.slane %v2815, 2
      %v2817 = vadd.f32 %v2815, %v2816
      %v2818 = vrot.slane %v2817, 1
      %v2819 = vadd.f32 %v2817, %v2818
      %v2820 = vsel %vm2075, %v2810, 0.0
      %v2821 = vrot.slane %v2820, 4
      %v2822 = vadd.f32 %v2820, %v2821
      %v2823 = vrot.slane %v2822, 2
      %v2824 = vadd.f32 %v2822, %v2823
      %v2825 = vrot.slane %v2824, 1
      %v2826 = vadd.f32 %v2824, %v2825
      %v2829 = vrot.slane %v2826, 4
      %v2830 = vsel %vm2075, %v2819, %v2829
      %v2832 = vrcp.pop %v2830
      %v2833 = vmul.f32 %v2830, %v2832
      %v2834 = vsub.f32 1.0, %v2833
      %v2835 = vmul.f32 %v2832, %v2834
      %v2836 = vadd.f32 %v2832, %v2835
      %vm2837 = vweird.f32 %v2830
      %vm2838 = vweird.f32 %v2832
      %vm2839 = vmor %vm2837, %vm2838
      %v2840 = vsel %vm2839, %v2832, %v2836
      %v2841 = vand.u32 2147483647, %v2830
      %vm2842 = vcmp.eq.f32.partialorder %v2841, 8.507059e+37
      %v2843 = vand.u32 %v2830, 2147483648
      %v2844 = vor.u32 1.1754944e-38, %v2843
      %v2845 = vsel %vm2842, %v2844, %v2840
      %v2846 = vmul.f32 %v2806, %v2845
      %2847 = vst [vmem:[%s237] sm:$0xff] %v2846
      %p2848 = scmp.lt.s32.totalorder %s15, 1
      %s2849 = scalar_select %p2848, %s15, 1
      %s2850 = smul.addr %s2849, 2
      %s2851 = smul.addr %s2850, 4
      %s2852 = scalar_lea.vmem %s4, %s2851
      // Predicated region
      $region44: #{dense_crf.1} parent=35 // pred_check
        %p2853 = pneg %p132
      $region45: #{dense_crf.1} parent=35 // pred_check_branch
        %2855 = sbr.rel (%p2853) target = $region47
      $region46: #{dense_crf.1} parent=35 // pred_region
        _
      $region47: #{dense_crf.1} parent=35 // pred_fallthru
        _
    $region36: #{dense_crf.1} parent=5 // pred_fallthru
      _
    %p2856 = scmp.le.s32.totalorder 2, %s10
    // Predicated region
    $region48: #{dense_crf.1} parent=5 // pred_check
      %p2857 = pneg %p2856
    $region49: #{dense_crf.1} parent=5 // pred_check_branch
      %2859 = sbr.rel (%p2857) target = $region51
    $region50: #{dense_crf.1} parent=5 // pred_region
      %s2860 = ssub.s32 %s10, 2
      // Predicated region
      $region52: #{dense_crf.1} parent=50 // pred_check
        %p2861 = pneg %p138
      $region53: #{dense_crf.1} parent=50 // pred_check_branch
        %2863 = sbr.rel (%p2861) target = $region55
      $region54: #{dense_crf.1} parent=50 // pred_region
        %p2864 = scmp.lt.s32.totalorder %s16, 1
        %s2865 = scalar_select %p2864, %s16, 1
        %s2866 = smul.addr %s2865, 2
        %s2867 = smul.addr %s2866, 4
        %s2868 = scalar_lea.vmem %s4, %s2867
      $region55: #{dense_crf.1} parent=50 // pred_fallthru
        _
    $region51: #{dense_crf.1} parent=5 // pred_fallthru
      _
  $region6: #{dense_crf.1} parent=0 // loop_footer
    %s14 = sadd.s32 1, %s10
  $region7: #{dense_crf.1} parent=0 // loop_footer_branch
    %9 = sbr.rel target = $region3
  $region8: #{dense_crf.1} parent=0 // loop_exit
    _

</llo_original>
